<compile_context>
chip_gen: v7x
topology: tpu7x:2x2x1
jax: 0.10.0
libtpu: 0.0.40
codegen_flags: <defaults>
</compile_context>

<pallas_src>
import functools

import jax
import jax.numpy as jnp
from jax.experimental import pallas as pl
from jax.experimental.pallas import tpu as pltpu


def _model_kernel(x_up_ref, x_mid_ref, x_dn_ref,
                  wpw_ref, bpw_ref, w7_ref, b7_ref, w8_ref, b8_ref,
                  o5_ref, o8_ref, stack_ref, *, W, THW):
    """One (TH rows x W cols) row-block of one image per grid step."""
    f32 = jnp.float32
    h = pl.program_id(1)
    nh = pl.num_programs(1)

    # ---- boundary masks, computed ONCE per step at (1, THW) ------------------
    flat = jax.lax.broadcasted_iota(jnp.int32, (1, THW), 1)
    col = flat % W
    m_not_left = col != 0                 # valid lanes of a +1 roll (w-1 tap)
    m_not_right = col != (W - 1)          # valid lanes of a -1 roll (w+1 tap)
    m_not_top = flat >= W                 # lanes outside the block's first row
    m_not_bot = flat < (THW - W)          # lanes outside the block's last row

    wpw = wpw_ref[...]                    # (10, 4)  = [w15 ; w6 @ w15]
    bpw = bpw_ref[...]                    # (10, 1)

    # ---- fused conv1..conv5 + folded conv6: one (10,4)@(4,THW) dot -----------
    pw = jnp.dot(wpw, x_mid_ref[0], preferred_element_type=f32) + bpw
    v4 = pw[0:8]                                           # (8, THW)
    o5_ref[0] = jnp.maximum(pw[8:10], 0.0)                 # relu(conv6) -> v7 slab

    # ---- halo rows of v4 for conv7 (pointwise on neighbour row blocks) -------
    w15, b15 = wpw[0:8], bpw[0:8]
    v4_up = jnp.dot(w15, x_up_ref[0], preferred_element_type=f32) + b15
    v4_dn = jnp.dot(w15, x_dn_ref[0], preferred_element_type=f32) + b15
    # roll(+W) places the up-block's LAST row in the first-row lanes,
    # roll(-W) places the down-block's FIRST row in the last-row lanes.
    halo_top = jnp.where(h > 0, pltpu.roll(v4_up, shift=W, axis=1), 0.0)
    halo_bot = jnp.where(h < nh - 1,
                         pltpu.roll(v4_dn, shift=THW - W, axis=1), 0.0)

    # ---- three row-shifted copies of v4 (rolls by +-W; halo fixed up once) ---
    r0 = jnp.where(m_not_top, pltpu.roll(v4, shift=W, axis=1), halo_top)       # v4[r-1]
    r1 = v4                                                                    # v4[r]
    r2 = jnp.where(m_not_bot, pltpu.roll(v4, shift=THW - W, axis=1), halo_bot)  # v4[r+1]

    def stacked_dot(w, t):
        """dot(w, [t[.,w-1]; t[.,w]; t[.,w+1]]) with taps stacked on sublanes."""
        stack_ref[0:8, :] = jnp.where(m_not_left,
                                      pltpu.roll(t, shift=1, axis=1), 0.0)
        stack_ref[8:16, :] = t
        stack_ref[16:24, :] = jnp.where(m_not_right,
                                        pltpu.roll(t, shift=THW - 1, axis=1), 0.0)
        return jnp.dot(w, stack_ref[...], preferred_element_type=f32)

    # ---- conv7 (3x3, 8->4, output padded to 8 rows): 3 fat K=24 dots ---------
    v6 = (stacked_dot(w7_ref[0], r0)
          + stacked_dot(w7_ref[1], r1)
          + stacked_dot(w7_ref[2], r2)
          + b7_ref[...])                                   # (8, THW), rows 4..7 == 0

    # ---- conv8 (1-D k=3 along W, 4->8): one K=24 dot --------------------------
    s = stacked_dot(w8_ref[...], v6) + b8_ref[...]         # (8, THW)
    o8_ref[0] = jnp.maximum(s, 0.0)                        # relu(conv8) -> v8 slab


def _fuse_params(p):
    """Fold conv1..conv6 pointwise chain; pre-stack conv7/conv8 weights."""
    f32 = jnp.float32
    w15 = p['w5'] @ p['w4'] @ p['w3'] @ p['w2'] @ p['w1']            # (8, 4)
    b15 = (p['w5'] @ (p['w4'] @ (p['w3'] @ (p['w2'] @ p['b1'] + p['b2'])
                                 + p['b3']) + p['b4']) + p['b5'])    # (8,)
    w_pw = jnp.concatenate([w15, p['w6'] @ w15], axis=0)             # (10, 4)
    b_pw = jnp.concatenate([b15, p['w6'] @ b15 + p['b6']])[:, None]  # (10, 1)

    # conv7 weights: (Cout=4,Cin=8,kh,kw) -> (kh, Cout_pad8, kw*8 + Cin)
    w7t = jnp.transpose(p['w7'], (2, 0, 3, 1))                       # (3, 4, 3, 8)
    w7s = jnp.zeros((3, 8, 3, 8), f32).at[:, :4].set(w7t).reshape(3, 8, 24)
    b7p = jnp.zeros((8,), f32).at[:4].set(p['b7'])[:, None]          # (8, 1)

    # conv8 weights: (Cout=8,Cin=4,k) -> (Cout, k*8 + Cin_pad8)
    w8t = jnp.transpose(p['w8'], (0, 2, 1))                          # (8, 3, 4)
    w8s = jnp.zeros((8, 3, 8), f32).at[:, :, :4].set(w8t).reshape(8, 24)

    return dict(w_pw=w_pw, b_pw=b_pw, w7s=w7s, b7=b7p,
                w8s=w8s, b8=p['b8'][:, None])


def _pick_row_block(H, W, target_lanes=16384):
    """Largest row block TH < H with H % TH == 0 and (TH*W) % 128 == 0 and
    TH*W <= target (keeps per-step VMEM ~1-2 MiB); fall back to the full image."""
    cands = [th for th in range(1, H)
             if H % th == 0 and (th * W) % 128 == 0 and th * W <= target_lanes]
    return max(cands) if cands else H


def model_forward(x_nchw, params, row_block=None):
    x = x_nchw.astype(jnp.float32)
    N, Cin, H, W = x.shape
    HW = H * W
    TH = row_block if row_block is not None else _pick_row_block(H, W)
    assert H % TH == 0
    nh = H // TH
    THW = TH * W
    x_flat = x.reshape(N, Cin, HW)                   # channel-major, zero-cost

    fused = _fuse_params(params)
    names = ('w_pw', 'b_pw', 'w7s', 'b7', 'w8s', 'b8')
    weights = [fused[k] for k in names]

    def const_spec(w):
        zeros = (0,) * w.ndim
        return pl.BlockSpec(w.shape, lambda n, h, z=zeros: z)

    x_mid_spec = pl.BlockSpec((1, Cin, THW), lambda n, h: (n, 0, h))
    x_up_spec = pl.BlockSpec((1, Cin, THW),
                             lambda n, h: (n, 0, jnp.maximum(h - 1, 0)))
    x_dn_spec = pl.BlockSpec((1, Cin, THW),
                             lambda n, h: (n, 0, jnp.minimum(h + 1, nh - 1)))

    kernel = functools.partial(_model_kernel, W=W, THW=THW)

    o5, o8 = pl.pallas_call(
        kernel,
        out_shape=(jax.ShapeDtypeStruct((N, 2, HW), jnp.float32),
                   jax.ShapeDtypeStruct((N, 8, HW), jnp.float32)),
        grid_spec=pltpu.PrefetchScalarGridSpec(
            num_scalar_prefetch=0,
            grid=(N, nh),
            in_specs=[x_up_spec, x_mid_spec, x_dn_spec]
                     + [const_spec(w) for w in weights],
            out_specs=(pl.BlockSpec((1, 2, THW), lambda n, h: (n, 0, h)),
                       pl.BlockSpec((1, 8, THW), lambda n, h: (n, 0, h))),
            scratch_shapes=[pltpu.VMEM((24, THW), jnp.float32)]),
        compiler_params=pltpu.CompilerParams(
            dimension_semantics=("parallel", "parallel"),
            vmem_limit_bytes=32 * 1024 * 1024),
    )(x_flat, x_flat, x_flat, *weights)

    # torch.flatten(., 1) on NCHW is channel-major: (N, C, HW) reshape is free.
    v7 = o5.reshape(N, 2 * HW)
    v8 = o8.reshape(N, 8 * HW)
    # TODO(synk): original `v9 = v7 + v8` is shape-incompatible
    # ((N, 2*H*W) vs (N, 8*H*W)) and raises in PyTorch; return both operands.
    return v7, v8


def init_params(key):
    """Deterministic synthetic weights in PyTorch-native (Cout, Cin, ...) layouts."""
    ks = jax.random.split(key, 16)

    def w(k, shape):
        return jax.random.normal(k, shape, jnp.float32) * 0.1

    return {
        'w1': w(ks[0], (16, 4)),       'b1': w(ks[1], (16,)),
        'w2': w(ks[2], (16, 16)),      'b2': w(ks[3], (16,)),
        'w3': w(ks[4], (32, 16)),      'b3': w(ks[5], (32,)),
        'w4': w(ks[6], (16, 32)),      'b4': w(ks[7], (16,)),
        'w5': w(ks[8], (8, 16)),       'b5': w(ks[9], (8,)),
        'w6': w(ks[10], (2, 8)),       'b6': w(ks[11], (2,)),
        'w7': w(ks[12], (4, 8, 3, 3)), 'b7': w(ks[13], (4,)),
        'w8': w(ks[14], (8, 4, 3)),    'b8': w(ks[15], (8,)),
    }


def reference_forward(x_nchw, p):
    """Pure-JAX reference with identical interpretation (unfused weights)."""
    x = x_nchw.astype(jnp.float32)
    N, _, H, W = x.shape

    def pw(t, w, b):                                  # w: (Cout, Cin), b: (Cout,)
        return jnp.einsum('oc,nchw->nohw', w, t) + b[None, :, None, None]

    v0 = pw(x, p['w1'], p['b1'])
    v1 = pw(v0, p['w2'], p['b2'])
    v2 = pw(v1, p['w3'], p['b3'])
    v3 = pw(v2, p['w4'], p['b4'])
    v4 = pw(v3, p['w5'], p['b5'])
    v5 = pw(v4, p['w6'], p['b6'])

    padded = jnp.pad(v4, ((0, 0), (0, 0), (1, 1), (1, 1)))
    v6 = jnp.zeros((N, 4, H, W), jnp.float32) + p['b7'][None, :, None, None]
    for kh in range(3):
        for kw in range(3):
            v6 = v6 + jnp.einsum('oc,nchw->nohw', p['w7'][:, :, kh, kw],
                                 padded[:, :, kh:kh + H, kw:kw + W])

    p8 = jnp.pad(v6, ((0, 0), (0, 0), (0, 0), (1, 1)))
    s = jnp.zeros((N, 8, H, W), jnp.float32) + p['b8'][None, :, None, None]
    for k in range(3):
        s = s + jnp.einsum('oc,nchw->nohw', p['w8'][:, :, k],
                           p8[:, :, :, k:k + W])

    v7 = jax.nn.relu(v5).reshape(N, -1)
    v8 = jax.nn.relu(s).reshape(N, -1)
    return v7, v8


if __name__ == "__main__":
    key = jax.random.PRNGKey(0)
    kx, kp = jax.random.split(key)
    # Small shapes consistent with the module (original was (1, 4, 256, 256)).
    x = jax.random.normal(kx, (2, 4, 16, 16), jnp.float32)   # NCHW
    params = init_params(kp)

    # Default path: TH=8 -> 2 row blocks per image (exercises the halo seam).
    v7, v8 = model_forward(x, params)
    jax.block_until_ready((v7, v8))

    r7, r8 = reference_forward(x, params)
    assert v7.shape == (2, 2 * 16 * 16) and v8.shape == (2, 8 * 16 * 16)
    assert jnp.allclose(v7, r7, atol=1e-4, rtol=1e-4), float(jnp.max(jnp.abs(v7 - r7)))
    assert jnp.allclose(v8, r8, atol=1e-4, rtol=1e-4), float(jnp.max(jnp.abs(v8 - r8)))

    # Single-block fallback path (whole image per step) must match too.
    w7f, w8f = model_forward(x, params, row_block=16)
    jax.block_until_ready((w7f, w8f))
    assert jnp.allclose(w7f, r7, atol=1e-4, rtol=1e-4), float(jnp.max(jnp.abs(w7f - r7)))
    assert jnp.allclose(w8f, r8, atol=1e-4, rtol=1e-4), float(jnp.max(jnp.abs(w8f - r8)))

    print("KERNEL_OK")
</pallas_src>

<mosaic_0001>
module attributes {stable_mosaic.version = 11 : i64} {
  func.func @_model_kernel(%arg0: i32, %arg1: i32, %arg2: memref<1x4x128xf32, #tpu.memory_space<vmem>>, %arg3: memref<1x4x128xf32, #tpu.memory_space<vmem>>, %arg4: memref<1x4x128xf32, #tpu.memory_space<vmem>>, %arg5: memref<10x4xf32, #tpu.memory_space<vmem>>, %arg6: memref<10x1xf32, #tpu.memory_space<vmem>>, %arg7: memref<3x8x24xf32, #tpu.memory_space<vmem>>, %arg8: memref<8x1xf32, #tpu.memory_space<vmem>>, %arg9: memref<8x24xf32, #tpu.memory_space<vmem>>, %arg10: memref<8x1xf32, #tpu.memory_space<vmem>>, %arg11: memref<1x2x128xf32, #tpu.memory_space<vmem>>, %arg12: memref<1x8x128xf32, #tpu.memory_space<vmem>>, %arg13: memref<24x128xf32, #tpu.memory_space<vmem>>) attributes {dimension_semantics = [#tpu.dimension_semantics<parallel>, #tpu.dimension_semantics<parallel>], iteration_bounds = array<i64: 2, 2>, scalar_prefetch = 0 : i64, scratch_operands = 1 : i64, tpu.core_type = #tpu.core_type<tc>, window_params = [{transform_indices = @transform_0, window_bounds = array<i64: 1, 4, 128>}, {transform_indices = @transform_1, window_bounds = array<i64: 1, 4, 128>}, {transform_indices = @transform_2, window_bounds = array<i64: 1, 4, 128>}, {pipeline_mode = #tpu.pipeline_mode<synchronous>, transform_indices = @transform_3, window_bounds = array<i64: 10, 4>}, {pipeline_mode = #tpu.pipeline_mode<synchronous>, transform_indices = @transform_4, window_bounds = array<i64: 10, 1>}, {pipeline_mode = #tpu.pipeline_mode<synchronous>, transform_indices = @transform_5, window_bounds = array<i64: 3, 8, 24>}, {pipeline_mode = #tpu.pipeline_mode<synchronous>, transform_indices = @transform_6, window_bounds = array<i64: 8, 1>}, {pipeline_mode = #tpu.pipeline_mode<synchronous>, transform_indices = @transform_7, window_bounds = array<i64: 8, 24>}, {pipeline_mode = #tpu.pipeline_mode<synchronous>, transform_indices = @transform_8, window_bounds = array<i64: 8, 1>}, {transform_indices = @transform_9, window_bounds = array<i64: 1, 2, 128>}, {transform_indices = @transform_10, window_bounds = array<i64: 1, 8, 128>}]} {
    %0 = tpu.iota {dimensions = array<i32: 1>} : vector<1x128xi32>
    %c16_i32 = arith.constant 16 : i32
    %c0_i32 = arith.constant 0 : i32
    %1 = arith.cmpi eq, %c16_i32, %c0_i32 : i32
    %c1_i32 = arith.constant 1 : i32
    %2 = arith.select %1, %c1_i32, %c16_i32 : i32
    %3 = vector.broadcast %2 : i32 to vector<1x128xi32>
    %4 = arith.remsi %0, %3 : vector<1x128xi32>
    %c0_i32_0 = arith.constant 0 : i32
    %5 = vector.broadcast %c0_i32_0 : i32 to vector<1x128xi32>
    %6 = arith.cmpi ne, %4, %5 : vector<1x128xi32>
    %c0_i32_1 = arith.constant 0 : i32
    %7 = vector.broadcast %c0_i32_1 : i32 to vector<1x128xi32>
    %8 = arith.cmpi slt, %4, %7 : vector<1x128xi32>
    %c0_i32_2 = arith.constant 0 : i32
    %9 = arith.cmpi slt, %2, %c0_i32_2 : i32
    %10 = vector.broadcast %9 : i1 to vector<1x128xi1>
    %11 = vector.broadcast %10 : vector<1x128xi1> to vector<1x128xi1>
    %12 = arith.xori %8, %11 : vector<1x128xi1>
    %13 = arith.andi %12, %6 : vector<1x128xi1>
    %14 = vector.broadcast %2 : i32 to vector<1x128xi32>
    %15 = arith.addi %4, %14 : vector<1x128xi32>
    %16 = arith.select %13, %15, %4 : vector<1x128xi1>, vector<1x128xi32>
    %c0_i32_3 = arith.constant 0 : i32
    %17 = vector.broadcast %c0_i32_3 : i32 to vector<1x128xi32>
    %18 = arith.cmpi ne, %16, %17 : vector<1x128xi32>
    %c15_i32 = arith.constant 15 : i32
    %19 = vector.broadcast %c15_i32 : i32 to vector<1x128xi32>
    %20 = arith.cmpi ne, %16, %19 : vector<1x128xi32>
    %c16_i32_4 = arith.constant 16 : i32
    %21 = vector.broadcast %c16_i32_4 : i32 to vector<1x128xi32>
    %22 = arith.cmpi sge, %0, %21 : vector<1x128xi32>
    %c112_i32 = arith.constant 112 : i32
    %23 = vector.broadcast %c112_i32 : i32 to vector<1x128xi32>
    %24 = arith.cmpi slt, %0, %23 : vector<1x128xi32>
    %c0 = arith.constant 0 : index
    %c0_5 = arith.constant 0 : index
    %25 = vector.load %arg5[%c0, %c0_5] : memref<10x4xf32, #tpu.memory_space<vmem>>, vector<10x4xf32>
    %c0_6 = arith.constant 0 : index
    %c0_7 = arith.constant 0 : index
    %26 = vector.load %arg6[%c0_6, %c0_7] : memref<10x1xf32, #tpu.memory_space<vmem>>, vector<10x1xf32>
    %c0_8 = arith.constant 0 : index
    %c0_9 = arith.constant 0 : index
    %c0_10 = arith.constant 0 : index
    %27 = vector.load %arg3[%c0_8, %c0_9, %c0_10] : memref<1x4x128xf32, #tpu.memory_space<vmem>>, vector<1x4x128xf32>
    %28 = vector.shape_cast %27 : vector<1x4x128xf32> to vector<4x128xf32>
    %cst = arith.constant dense<0.000000e+00> : vector<10x128xf32>
    %29 = tpu.matmul %25, %28, %cst {dimension_numbers = #tpu.dot_dimension_numbers<[1], [0], [0], [1], [0, 0, 1, 1], [], []>} : vector<10x4xf32>, vector<4x128xf32>, vector<10x128xf32> -> vector<10x128xf32>
    %30 = vector.broadcast %26 : vector<10x1xf32> to vector<10x128xf32>
    %31 = arith.addf %29, %30 : vector<10x128xf32>
    %32 = vector.extract_strided_slice %31 {offsets = [0, 0], sizes = [8, 128], strides = [1, 1]} : vector<10x128xf32> to vector<8x128xf32>
    %33 = vector.extract_strided_slice %31 {offsets = [8, 0], sizes = [2, 128], strides = [1, 1]} : vector<10x128xf32> to vector<2x128xf32>
    %cst_11 = arith.constant 0.000000e+00 : f32
    %34 = vector.broadcast %cst_11 : f32 to vector<2x128xf32>
    %35 = arith.maximumf %33, %34 : vector<2x128xf32>
    %c0_12 = arith.constant 0 : index
    %c0_13 = arith.constant 0 : index
    %c0_14 = arith.constant 0 : index
    %36 = vector.load %arg11[%c0_12, %c0_13, %c0_14] : memref<1x2x128xf32, #tpu.memory_space<vmem>>, vector<1x2x128xf32>
    %37 = vector.shape_cast %36 : vector<1x2x128xf32> to vector<2x128xf32>
    %38 = vector.shape_cast %35 : vector<2x128xf32> to vector<1x2x128xf32>
    tpu.vector_store %arg11[%c0_12, %c0_13, %c0_14], %38 {strides = array<i32>} : memref<1x2x128xf32, #tpu.memory_space<vmem>>, vector<1x2x128xf32>,
    %39 = vector.extract_strided_slice %25 {offsets = [0, 0], sizes = [8, 4], strides = [1, 1]} : vector<10x4xf32> to vector<8x4xf32>
    %40 = vector.extract_strided_slice %26 {offsets = [0, 0], sizes = [8, 1], strides = [1, 1]} : vector<10x1xf32> to vector<8x1xf32>
    %c0_15 = arith.constant 0 : index
    %c0_16 = arith.constant 0 : index
    %c0_17 = arith.constant 0 : index
    %41 = vector.load %arg2[%c0_15, %c0_16, %c0_17] : memref<1x4x128xf32, #tpu.memory_space<vmem>>, vector<1x4x128xf32>
    %42 = vector.shape_cast %41 : vector<1x4x128xf32> to vector<4x128xf32>
    %cst_18 = arith.constant dense<0.000000e+00> : vector<8x128xf32>
    %43 = tpu.matmul %39, %42, %cst_18 {dimension_numbers = #tpu.dot_dimension_numbers<[1], [0], [0], [1], [0, 0, 1, 1], [], []>} : vector<8x4xf32>, vector<4x128xf32>, vector<8x128xf32> -> vector<8x128xf32>
    %44 = vector.broadcast %40 : vector<8x1xf32> to vector<8x128xf32>
    %45 = arith.addf %43, %44 : vector<8x128xf32>
    %c0_19 = arith.constant 0 : index
    %c0_20 = arith.constant 0 : index
    %c0_21 = arith.constant 0 : index
    %46 = vector.load %arg4[%c0_19, %c0_20, %c0_21] : memref<1x4x128xf32, #tpu.memory_space<vmem>>, vector<1x4x128xf32>
    %47 = vector.shape_cast %46 : vector<1x4x128xf32> to vector<4x128xf32>
    %cst_22 = arith.constant dense<0.000000e+00> : vector<8x128xf32>
    %48 = tpu.matmul %39, %47, %cst_22 {dimension_numbers = #tpu.dot_dimension_numbers<[1], [0], [0], [1], [0, 0, 1, 1], [], []>} : vector<8x4xf32>, vector<4x128xf32>, vector<8x128xf32> -> vector<8x128xf32>
    %49 = vector.broadcast %40 : vector<8x1xf32> to vector<8x128xf32>
    %50 = arith.addf %48, %49 : vector<8x128xf32>
    %c0_i32_23 = arith.constant 0 : i32
    %51 = arith.cmpi sgt, %arg1, %c0_i32_23 : i32
    %c16_i32_24 = arith.constant 16 : i32
    %52 = tpu.dynamic_rotate %45 by %c16_i32_24 dim 1 : vector<8x128xf32>, i32 -> vector<8x128xf32>
    %cst_25 = arith.constant 0.000000e+00 : f32
    %53 = vector.broadcast %cst_25 : f32 to vector<8x128xf32>
    %54 = arith.select %51, %52, %53 : vector<8x128xf32>
    %c1_i32_26 = arith.constant 1 : i32
    %55 = arith.cmpi slt, %arg1, %c1_i32_26 : i32
    %c112_i32_27 = arith.constant 112 : i32
    %56 = tpu.dynamic_rotate %50 by %c112_i32_27 dim 1 : vector<8x128xf32>, i32 -> vector<8x128xf32>
    %cst_28 = arith.constant 0.000000e+00 : f32
    %57 = vector.broadcast %cst_28 : f32 to vector<8x128xf32>
    %58 = arith.select %55, %56, %57 : vector<8x128xf32>
    %c16_i32_29 = arith.constant 16 : i32
    %59 = tpu.dynamic_rotate %32 by %c16_i32_29 dim 1 : vector<8x128xf32>, i32 -> vector<8x128xf32>
    %60 = vector.shape_cast %22 : vector<1x128xi1> to vector<1x128xi1>
    %61 = vector.broadcast %60 : vector<1x128xi1> to vector<8x128xi1>
    %62 = arith.select %61, %59, %54 : vector<8x128xi1>, vector<8x128xf32>
    %c112_i32_30 = arith.constant 112 : i32
    %63 = tpu.dynamic_rotate %32 by %c112_i32_30 dim 1 : vector<8x128xf32>, i32 -> vector<8x128xf32>
    %64 = vector.shape_cast %24 : vector<1x128xi1> to vector<1x128xi1>
    %65 = vector.broadcast %64 : vector<1x128xi1> to vector<8x128xi1>
    %66 = arith.select %65, %63, %58 : vector<8x128xi1>, vector<8x128xf32>
    %c0_31 = arith.constant 0 : index
    %c0_32 = arith.constant 0 : index
    %c0_33 = arith.constant 0 : index
    %67 = vector.load %arg7[%c0_31, %c0_32, %c0_33] : memref<3x8x24xf32, #tpu.memory_space<vmem>>, vector<1x8x24xf32>
    %68 = vector.shape_cast %67 : vector<1x8x24xf32> to vector<8x24xf32>
    %c1_i32_34 = arith.constant 1 : i32
    %69 = tpu.dynamic_rotate %62 by %c1_i32_34 dim 1 : vector<8x128xf32>, i32 -> vector<8x128xf32>
    %cst_35 = arith.constant 0.000000e+00 : f32
    %70 = vector.shape_cast %18 : vector<1x128xi1> to vector<1x128xi1>
    %71 = vector.broadcast %70 : vector<1x128xi1> to vector<8x128xi1>
    %72 = vector.broadcast %cst_35 : f32 to vector<8x128xf32>
    %73 = arith.select %71, %69, %72 : vector<8x128xi1>, vector<8x128xf32>
    %c0_36 = arith.constant 0 : index
    %c0_37 = arith.constant 0 : index
    %74 = vector.load %arg13[%c0_36, %c0_37] : memref<24x128xf32, #tpu.memory_space<vmem>>, vector<8x128xf32>
    tpu.vector_store %arg13[%c0_36, %c0_37], %73 {strides = array<i32>} : memref<24x128xf32, #tpu.memory_space<vmem>>, vector<8x128xf32>,
    %c8 = arith.constant 8 : index
    %c0_38 = arith.constant 0 : index
    %75 = vector.load %arg13[%c8, %c0_38] : memref<24x128xf32, #tpu.memory_space<vmem>>, vector<8x128xf32>
    tpu.vector_store %arg13[%c8, %c0_38], %62 {strides = array<i32>} : memref<24x128xf32, #tpu.memory_space<vmem>>, vector<8x128xf32>,
    %c127_i32 = arith.constant 127 : i32
    %76 = tpu.dynamic_rotate %62 by %c127_i32 dim 1 : vector<8x128xf32>, i32 -> vector<8x128xf32>
    %cst_39 = arith.constant 0.000000e+00 : f32
    %77 = vector.shape_cast %20 : vector<1x128xi1> to vector<1x128xi1>
    %78 = vector.broadcast %77 : vector<1x128xi1> to vector<8x128xi1>
    %79 = vector.broadcast %cst_39 : f32 to vector<8x128xf32>
    %80 = arith.select %78, %76, %79 : vector<8x128xi1>, vector<8x128xf32>
    %c16 = arith.constant 16 : index
    %c0_40 = arith.constant 0 : index
    %81 = vector.load %arg13[%c16, %c0_40] : memref<24x128xf32, #tpu.memory_space<vmem>>, vector<8x128xf32>
    tpu.vector_store %arg13[%c16, %c0_40], %80 {strides = array<i32>} : memref<24x128xf32, #tpu.memory_space<vmem>>, vector<8x128xf32>,
    %c0_41 = arith.constant 0 : index
    %c0_42 = arith.constant 0 : index
    %82 = vector.load %arg13[%c0_41, %c0_42] : memref<24x128xf32, #tpu.memory_space<vmem>>, vector<24x128xf32>
    %cst_43 = arith.constant dense<0.000000e+00> : vector<8x128xf32>
    %83 = tpu.matmul %68, %82, %cst_43 {dimension_numbers = #tpu.dot_dimension_numbers<[1], [0], [0], [1], [0, 0, 1, 1], [], []>} : vector<8x24xf32>, vector<24x128xf32>, vector<8x128xf32> -> vector<8x128xf32>
    %c1 = arith.constant 1 : index
    %c0_44 = arith.constant 0 : index
    %c0_45 = arith.constant 0 : index
    %84 = vector.load %arg7[%c1, %c0_44, %c0_45] : memref<3x8x24xf32, #tpu.memory_space<vmem>>, vector<1x8x24xf32>
    %85 = vector.shape_cast %84 : vector<1x8x24xf32> to vector<8x24xf32>
    %c1_i32_46 = arith.constant 1 : i32
    %86 = tpu.dynamic_rotate %32 by %c1_i32_46 dim 1 : vector<8x128xf32>, i32 -> vector<8x128xf32>
    %cst_47 = arith.constant 0.000000e+00 : f32
    %87 = vector.shape_cast %18 : vector<1x128xi1> to vector<1x128xi1>
    %88 = vector.broadcast %87 : vector<1x128xi1> to vector<8x128xi1>
    %89 = vector.broadcast %cst_47 : f32 to vector<8x128xf32>
    %90 = arith.select %88, %86, %89 : vector<8x128xi1>, vector<8x128xf32>
    %c0_48 = arith.constant 0 : index
    %c0_49 = arith.constant 0 : index
    %91 = vector.load %arg13[%c0_48, %c0_49] : memref<24x128xf32, #tpu.memory_space<vmem>>, vector<8x128xf32>
    tpu.vector_store %arg13[%c0_48, %c0_49], %90 {strides = array<i32>} : memref<24x128xf32, #tpu.memory_space<vmem>>, vector<8x128xf32>,
    %c8_50 = arith.constant 8 : index
    %c0_51 = arith.constant 0 : index
    %92 = vector.load %arg13[%c8_50, %c0_51] : memref<24x128xf32, #tpu.memory_space<vmem>>, vector<8x128xf32>
    tpu.vector_store %arg13[%c8_50, %c0_51], %32 {strides = array<i32>} : memref<24x128xf32, #tpu.memory_space<vmem>>, vector<8x128xf32>,
    %c127_i32_52 = arith.constant 127 : i32
    %93 = tpu.dynamic_rotate %32 by %c127_i32_52 dim 1 : vector<8x128xf32>, i32 -> vector<8x128xf32>
    %cst_53 = arith.constant 0.000000e+00 : f32
    %94 = vector.shape_cast %20 : vector<1x128xi1> to vector<1x128xi1>
    %95 = vector.broadcast %94 : vector<1x128xi1> to vector<8x128xi1>
    %96 = vector.broadcast %cst_53 : f32 to vector<8x128xf32>
    %97 = arith.select %95, %93, %96 : vector<8x128xi1>, vector<8x128xf32>
    %c16_54 = arith.constant 16 : index
    %c0_55 = arith.constant 0 : index
    %98 = vector.load %arg13[%c16_54, %c0_55] : memref<24x128xf32, #tpu.memory_space<vmem>>, vector<8x128xf32>
    tpu.vector_store %arg13[%c16_54, %c0_55], %97 {strides = array<i32>} : memref<24x128xf32, #tpu.memory_space<vmem>>, vector<8x128xf32>,
    %c0_56 = arith.constant 0 : index
    %c0_57 = arith.constant 0 : index
    %99 = vector.load %arg13[%c0_56, %c0_57] : memref<24x128xf32, #tpu.memory_space<vmem>>, vector<24x128xf32>
    %cst_58 = arith.constant dense<0.000000e+00> : vector<8x128xf32>
    %100 = tpu.matmul %85, %99, %cst_58 {dimension_numbers = #tpu.dot_dimension_numbers<[1], [0], [0], [1], [0, 0, 1, 1], [], []>} : vector<8x24xf32>, vector<24x128xf32>, vector<8x128xf32> -> vector<8x128xf32>
    %101 = arith.addf %83, %100 : vector<8x128xf32>
    %c2 = arith.constant 2 : index
    %c0_59 = arith.constant 0 : index
    %c0_60 = arith.constant 0 : index
    %102 = vector.load %arg7[%c2, %c0_59, %c0_60] : memref<3x8x24xf32, #tpu.memory_space<vmem>>, vector<1x8x24xf32>
    %103 = vector.shape_cast %102 : vector<1x8x24xf32> to vector<8x24xf32>
    %c1_i32_61 = arith.constant 1 : i32
    %104 = tpu.dynamic_rotate %66 by %c1_i32_61 dim 1 : vector<8x128xf32>, i32 -> vector<8x128xf32>
    %cst_62 = arith.constant 0.000000e+00 : f32
    %105 = vector.shape_cast %18 : vector<1x128xi1> to vector<1x128xi1>
    %106 = vector.broadcast %105 : vector<1x128xi1> to vector<8x128xi1>
    %107 = vector.broadcast %cst_62 : f32 to vector<8x128xf32>
    %108 = arith.select %106, %104, %107 : vector<8x128xi1>, vector<8x128xf32>
    %c0_63 = arith.constant 0 : index
    %c0_64 = arith.constant 0 : index
    %109 = vector.load %arg13[%c0_63, %c0_64] : memref<24x128xf32, #tpu.memory_space<vmem>>, vector<8x128xf32>
    tpu.vector_store %arg13[%c0_63, %c0_64], %108 {strides = array<i32>} : memref<24x128xf32, #tpu.memory_space<vmem>>, vector<8x128xf32>,
    %c8_65 = arith.constant 8 : index
    %c0_66 = arith.constant 0 : index
    %110 = vector.load %arg13[%c8_65, %c0_66] : memref<24x128xf32, #tpu.memory_space<vmem>>, vector<8x128xf32>
    tpu.vector_store %arg13[%c8_65, %c0_66], %66 {strides = array<i32>} : memref<24x128xf32, #tpu.memory_space<vmem>>, vector<8x128xf32>,
    %c127_i32_67 = arith.constant 127 : i32
    %111 = tpu.dynamic_rotate %66 by %c127_i32_67 dim 1 : vector<8x128xf32>, i32 -> vector<8x128xf32>
    %cst_68 = arith.constant 0.000000e+00 : f32
    %112 = vector.shape_cast %20 : vector<1x128xi1> to vector<1x128xi1>
    %113 = vector.broadcast %112 : vector<1x128xi1> to vector<8x128xi1>
    %114 = vector.broadcast %cst_68 : f32 to vector<8x128xf32>
    %115 = arith.select %113, %111, %114 : vector<8x128xi1>, vector<8x128xf32>
    %c16_69 = arith.constant 16 : index
    %c0_70 = arith.constant 0 : index
    %116 = vector.load %arg13[%c16_69, %c0_70] : memref<24x128xf32, #tpu.memory_space<vmem>>, vector<8x128xf32>
    tpu.vector_store %arg13[%c16_69, %c0_70], %115 {strides = array<i32>} : memref<24x128xf32, #tpu.memory_space<vmem>>, vector<8x128xf32>,
    %c0_71 = arith.constant 0 : index
    %c0_72 = arith.constant 0 : index
    %117 = vector.load %arg13[%c0_71, %c0_72] : memref<24x128xf32, #tpu.memory_space<vmem>>, vector<24x128xf32>
    %cst_73 = arith.constant dense<0.000000e+00> : vector<8x128xf32>
    %118 = tpu.matmul %103, %117, %cst_73 {dimension_numbers = #tpu.dot_dimension_numbers<[1], [0], [0], [1], [0, 0, 1, 1], [], []>} : vector<8x24xf32>, vector<24x128xf32>, vector<8x128xf32> -> vector<8x128xf32>
    %119 = arith.addf %101, %118 : vector<8x128xf32>
    %c0_74 = arith.constant 0 : index
    %c0_75 = arith.constant 0 : index
    %120 = vector.load %arg8[%c0_74, %c0_75] : memref<8x1xf32, #tpu.memory_space<vmem>>, vector<8x1xf32>
    %121 = vector.broadcast %120 : vector<8x1xf32> to vector<8x128xf32>
    %122 = arith.addf %119, %121 : vector<8x128xf32>
    %c0_76 = arith.constant 0 : index
    %c0_77 = arith.constant 0 : index
    %123 = vector.load %arg9[%c0_76, %c0_77] : memref<8x24xf32, #tpu.memory_space<vmem>>, vector<8x24xf32>
    %c1_i32_78 = arith.constant 1 : i32
    %124 = tpu.dynamic_rotate %122 by %c1_i32_78 dim 1 : vector<8x128xf32>, i32 -> vector<8x128xf32>
    %cst_79 = arith.constant 0.000000e+00 : f32
    %125 = vector.shape_cast %18 : vector<1x128xi1> to vector<1x128xi1>
    %126 = vector.broadcast %125 : vector<1x128xi1> to vector<8x128xi1>
    %127 = vector.broadcast %cst_79 : f32 to vector<8x128xf32>
    %128 = arith.select %126, %124, %127 : vector<8x128xi1>, vector<8x128xf32>
    %c0_80 = arith.constant 0 : index
    %c0_81 = arith.constant 0 : index
    %129 = vector.load %arg13[%c0_80, %c0_81] : memref<24x128xf32, #tpu.memory_space<vmem>>, vector<8x128xf32>
    tpu.vector_store %arg13[%c0_80, %c0_81], %128 {strides = array<i32>} : memref<24x128xf32, #tpu.memory_space<vmem>>, vector<8x128xf32>,
    %c8_82 = arith.constant 8 : index
    %c0_83 = arith.constant 0 : index
    %130 = vector.load %arg13[%c8_82, %c0_83] : memref<24x128xf32, #tpu.memory_space<vmem>>, vector<8x128xf32>
    tpu.vector_store %arg13[%c8_82, %c0_83], %122 {strides = array<i32>} : memref<24x128xf32, #tpu.memory_space<vmem>>, vector<8x128xf32>,
    %c127_i32_84 = arith.constant 127 : i32
    %131 = tpu.dynamic_rotate %122 by %c127_i32_84 dim 1 : vector<8x128xf32>, i32 -> vector<8x128xf32>
    %cst_85 = arith.constant 0.000000e+00 : f32
    %132 = vector.shape_cast %20 : vector<1x128xi1> to vector<1x128xi1>
    %133 = vector.broadcast %132 : vector<1x128xi1> to vector<8x128xi1>
    %134 = vector.broadcast %cst_85 : f32 to vector<8x128xf32>
    %135 = arith.select %133, %131, %134 : vector<8x128xi1>, vector<8x128xf32>
    %c16_86 = arith.constant 16 : index
    %c0_87 = arith.constant 0 : index
    %136 = vector.load %arg13[%c16_86, %c0_87] : memref<24x128xf32, #tpu.memory_space<vmem>>, vector<8x128xf32>
    tpu.vector_store %arg13[%c16_86, %c0_87], %135 {strides = array<i32>} : memref<24x128xf32, #tpu.memory_space<vmem>>, vector<8x128xf32>,
    %c0_88 = arith.constant 0 : index
    %c0_89 = arith.constant 0 : index
    %137 = vector.load %arg13[%c0_88, %c0_89] : memref<24x128xf32, #tpu.memory_space<vmem>>, vector<24x128xf32>
    %cst_90 = arith.constant dense<0.000000e+00> : vector<8x128xf32>
    %138 = tpu.matmul %123, %137, %cst_90 {dimension_numbers = #tpu.dot_dimension_numbers<[1], [0], [0], [1], [0, 0, 1, 1], [], []>} : vector<8x24xf32>, vector<24x128xf32>, vector<8x128xf32> -> vector<8x128xf32>
    %c0_91 = arith.constant 0 : index
    %c0_92 = arith.constant 0 : index
    %139 = vector.load %arg10[%c0_91, %c0_92] : memref<8x1xf32, #tpu.memory_space<vmem>>, vector<8x1xf32>
    %140 = vector.broadcast %139 : vector<8x1xf32> to vector<8x128xf32>
    %141 = arith.addf %138, %140 : vector<8x128xf32>
    %cst_93 = arith.constant 0.000000e+00 : f32
    %142 = vector.broadcast %cst_93 : f32 to vector<8x128xf32>
    %143 = arith.maximumf %141, %142 : vector<8x128xf32>
    %c0_94 = arith.constant 0 : index
    %c0_95 = arith.constant 0 : index
    %c0_96 = arith.constant 0 : index
    %144 = vector.load %arg12[%c0_94, %c0_95, %c0_96] : memref<1x8x128xf32, #tpu.memory_space<vmem>>, vector<1x8x128xf32>
    %145 = vector.shape_cast %144 : vector<1x8x128xf32> to vector<8x128xf32>
    %146 = vector.shape_cast %143 : vector<8x128xf32> to vector<1x8x128xf32>
    tpu.vector_store %arg12[%c0_94, %c0_95, %c0_96], %146 {strides = array<i32>} : memref<1x8x128xf32, #tpu.memory_space<vmem>>, vector<1x8x128xf32>,
    return
  }
  func.func @transform_0(%arg0: i32, %arg1: i32) -> (i32, i32, i32) {
    %c1_i32 = arith.constant 1 : i32
    %0 = arith.subi %arg1, %c1_i32 : i32
    %c0_i32 = arith.constant 0 : i32
    %1 = arith.maxsi %0, %c0_i32 : i32
    %c0_i32_0 = arith.constant 0 : i32
    %c0_i32_1 = arith.constant 0 : i32
    return %arg0, %c0_i32_0, %1 : i32, i32, i32
  }
  func.func @transform_1(%arg0: i32, %arg1: i32) -> (i32, i32, i32) {
    %c0_i32 = arith.constant 0 : i32
    %c0_i32_0 = arith.constant 0 : i32
    return %arg0, %c0_i32, %arg1 : i32, i32, i32
  }
  func.func @transform_2(%arg0: i32, %arg1: i32) -> (i32, i32, i32) {
    %c1_i32 = arith.constant 1 : i32
    %0 = arith.addi %arg1, %c1_i32 : i32
    %c1_i32_0 = arith.constant 1 : i32
    %1 = arith.minsi %0, %c1_i32_0 : i32
    %c0_i32 = arith.constant 0 : i32
    %c0_i32_1 = arith.constant 0 : i32
    return %arg0, %c0_i32, %1 : i32, i32, i32
  }
  func.func @transform_3(%arg0: i32, %arg1: i32) -> (i32, i32) {
    %c0_i32 = arith.constant 0 : i32
    %c0_i32_0 = arith.constant 0 : i32
    %c0_i32_1 = arith.constant 0 : i32
    return %c0_i32, %c0_i32_0 : i32, i32
  }
  func.func @transform_4(%arg0: i32, %arg1: i32) -> (i32, i32) {
    %c0_i32 = arith.constant 0 : i32
    %c0_i32_0 = arith.constant 0 : i32
    %c0_i32_1 = arith.constant 0 : i32
    return %c0_i32, %c0_i32_0 : i32, i32
  }
  func.func @transform_5(%arg0: i32, %arg1: i32) -> (i32, i32, i32) {
    %c0_i32 = arith.constant 0 : i32
    %c0_i32_0 = arith.constant 0 : i32
    %c0_i32_1 = arith.constant 0 : i32
    %c0_i32_2 = arith.constant 0 : i32
    return %c0_i32, %c0_i32_0, %c0_i32_1 : i32, i32, i32
  }
  func.func @transform_6(%arg0: i32, %arg1: i32) -> (i32, i32) {
    %c0_i32 = arith.constant 0 : i32
    %c0_i32_0 = arith.constant 0 : i32
    %c0_i32_1 = arith.constant 0 : i32
    return %c0_i32, %c0_i32_0 : i32, i32
  }
  func.func @transform_7(%arg0: i32, %arg1: i32) -> (i32, i32) {
    %c0_i32 = arith.constant 0 : i32
    %c0_i32_0 = arith.constant 0 : i32
    %c0_i32_1 = arith.constant 0 : i32
    return %c0_i32, %c0_i32_0 : i32, i32
  }
  func.func @transform_8(%arg0: i32, %arg1: i32) -> (i32, i32) {
    %c0_i32 = arith.constant 0 : i32
    %c0_i32_0 = arith.constant 0 : i32
    %c0_i32_1 = arith.constant 0 : i32
    return %c0_i32, %c0_i32_0 : i32, i32
  }
  func.func @transform_9(%arg0: i32, %arg1: i32) -> (i32, i32, i32) {
    %c0_i32 = arith.constant 0 : i32
    %c0_i32_0 = arith.constant 0 : i32
    return %arg0, %c0_i32, %arg1 : i32, i32, i32
  }
  func.func @transform_10(%arg0: i32, %arg1: i32) -> (i32, i32, i32) {
    %c0_i32 = arith.constant 0 : i32
    %c0_i32_0 = arith.constant 0 : i32
    return %arg0, %c0_i32, %arg1 : i32, i32, i32
  }
}

</mosaic_0001>

<llo_original>
// kernel: tpu_custom_call.1
$region0: #{tpu_custom_call.1}
  #allocation0 [shape = 'u32[]', space=smem, size = 0x4, offset = 0x4, fixed_abs, tag = 'smem constant byte address 0x4 - core index']
  #allocation1 [shape = 'u32[144,128]{1,0:T(1,128)}', space=vmem, size = 0x12000, scoped, tag = 'internal scratch']
  #allocation2 [shape = 'f32[24,128]{1,0:T(8,128)}', space=vmem, size = 0x3000, scoped, tag = 'scratch operand']
  %s0 = inlined_call_operand.vmem [shape: f32[2,4,256], index: 0, kind: input, shape index: {}]
  %s1 = inlined_call_operand.vmem [shape: f32[2,4,256], index: 1, kind: input, shape index: {}]
  %s2 = inlined_call_operand.hbm [shape: f32[2,4,256], index: 2, kind: input, shape index: {}]
  %s3 = inlined_call_operand.vmem [shape: f32[10,4], index: 3, kind: input, shape index: {}]
  %s4 = inlined_call_operand.vmem [shape: f32[10,1], index: 4, kind: input, shape index: {}]
  %s5 = inlined_call_operand.vmem [shape: f32[3,8,24], index: 5, kind: input, shape index: {}]
  %s6 = inlined_call_operand.vmem [shape: f32[8,1], index: 6, kind: input, shape index: {}]
  %s7 = inlined_call_operand.vmem [shape: f32[8,24], index: 7, kind: input, shape index: {}]
  %s8 = inlined_call_operand.vmem [shape: f32[8,1], index: 8, kind: input, shape index: {}]
  %s9 = inlined_call_operand.hbm [shape: f32[2,2,256], index: 9, kind: output, shape index: {0}]
  %s10 = inlined_call_operand.hbm [shape: f32[2,8,256], index: 10, kind: output, shape index: {1}]
  %11 = xla_tuple %s9, %s10
  %s12 = sld [smem:[#allocation0]]
  $region81: #{tpu_custom_call.1} parent=0
    _
  %s14 = ssub.s32 1, %s12
  %s15 = scalar_select 0, %s14, %s12
  $region1: #{tpu_custom_call.1} parent=0
    #allocation3 [shape = 'u8[4096]{0}', space=vmem, size = 0x1000, scoped, tag = 'input window, operand 2']
    #allocation4 [shape = 's32[2]{0}', space=sflag, size = 0x8, scoped, tag = 'scoped memory for tpu_custom_call.1']
    #allocation5 [shape = 's32[2]{0}', space=sflag, size = 0x8, scoped, tag = 'scoped memory for tpu_custom_call.1']
    #allocation6 [shape = 'u8[2048]{0}', space=vmem, size = 0x800, scoped, tag = 'output window, operand 0']
    #allocation7 [shape = 'u8[8192]{0}', space=vmem, size = 0x2000, scoped, tag = 'output window, operand 1']
    #allocation8 [shape = 's32[2]{0}', space=sflag, size = 0x8, scoped, tag = 'scoped memory for tpu_custom_call.1']
    %16 = vsyncpa [#allocation4], 0
    %s17 = scalar_lea.sflag [#allocation4], 1
    %18 = vsyncpa %s17, 0
    %19 = vsyncpa [#allocation5], 0
    %s20 = scalar_lea.sflag [#allocation5], 1
    %21 = vsyncpa %s20, 0
    %22 = vsyncpa [#allocation8], 0
    %s23 = scalar_lea.sflag [#allocation8], 1
    %24 = vsyncpa %s23, 0
    loop: start=0, step=1, limit=6
    $region2: #{tpu_custom_call.1} parent=1 // loop_pre_header
      _
    $region3: #{tpu_custom_call.1} parent=1 // loop_header
      %s26 = sphi 0, %s30
      %p27 = scmp.ge.s32.totalorder %s26, 6
      %s33 = sphi 0, %s45
      %s34 = sphi 0, %s41
      %s35 = sphi 0, %s33
      %s36 = sphi 0, %s34
      %s37 = sphi 0, %s35
      %s38 = sphi 0, %s36
      %s56 = sphi 0, %s58
      %s59 = sphi 0, %s56
      %s60 = sphi 0, %s59
      %s76 = sphi 0, %s60
      %s84 = sphi 0, %s86
      %s87 = sphi 0, %s84
      %s88 = sphi 0, %s87
      %s104 = sphi 0, %s88
      %s118 = sphi 0, %s120
      %s121 = sphi 0, %s118
      %s122 = sphi 0, %s121
      %s138 = sphi 0, %s122
      %s142 = sphi 0, %s142
      %s144 = sphi 0, %s142
      %s145 = sphi 0, %s144
      %s159 = sphi 0, %s145
      %s163 = sphi 0, %s163
      %s165 = sphi 0, %s163
      %s166 = sphi 0, %s165
      %s180 = sphi 0, %s166
      %s184 = sphi 0, %s184
      %s186 = sphi 0, %s184
      %s187 = sphi 0, %s186
      %s201 = sphi 0, %s187
      %s205 = sphi 0, %s205
      %s207 = sphi 0, %s205
      %s208 = sphi 0, %s207
      %s222 = sphi 0, %s208
      %s226 = sphi 0, %s226
      %s228 = sphi 0, %s226
      %s229 = sphi 0, %s228
      %s243 = sphi 0, %s229
      %s247 = sphi 0, %s247
      %s249 = sphi 0, %s247
      %s250 = sphi 0, %s249
      %s264 = sphi 0, %s250
      %s272 = sphi 0, %s274
      %s275 = sphi 0, %s272
      %s276 = sphi 0, %s275
      %s292 = sphi 0, %s276
      %s300 = sphi 0, %s302
      %s303 = sphi 0, %s300
      %s304 = sphi 0, %s303
      %s320 = sphi 0, %s304
    $region4: #{tpu_custom_call.1} parent=1 // loop_header_branch
      %29 = sbr.rel (%p27) target = $region8
    $region5: #{tpu_custom_call.1} parent=1 // loop_body
      %s31 = ssub.s32 %s26, 1
      %s32 = ssub.s32 %s26, 2
      %s39 = sadd.s32 1, %s34
      %p40 = scmp.ge.s32.totalorder %s39, 2
      %s41 = scalar_select %p40, 0, %s39
      %s42 = sadd.s32 1, %s33
      %s43 = scalar_select %p40, %s42, %s33
      %p44 = scmp.ge.s32.totalorder %s43, 2
      %s45 = scalar_select %p44, 0, %s43
      %s46 = ssub.s32 %s34, 1
      %p47 = scmp.gt.s32.totalorder %s46, 0
      %s48 = scalar_select %p47, %s46, 0
      %s49 = ssub.s32 %s41, 1
      %p50 = scmp.gt.s32.totalorder %s49, 0
      %s51 = scalar_select %p50, %s49, 0
      %s52 = ssub.s32 %s33, %s45
      %s53 = ssub.s32 %s48, %s51
      %s54 = sor.u32 %s52, %s53
      %p55 = scmp.eq.s32.totalorder %s54, 0
      %s57 = sadd.s32 %s56, 1
      %s58 = scalar_select %p55, %s56, %s57
      %p61 = pneg %p55
      %p62 = scmp.eq.s32.totalorder %s26, 3
      %p63 = por %p61, %p62
      %p64 = scmp.ne.s32.totalorder %s56, %s59
      %p65 = scmp.eq.s32.totalorder %s26, 0
      %p66 = por %p64, %p65
      %p67 = scmp.ne.s32.totalorder %s56, %s59
      %p68 = scmp.eq.s32.totalorder %s31, 3
      %p69 = por %p67, %p68
      %p70 = scmp.ne.s32.totalorder %s59, %s60
      %p71 = scmp.eq.s32.totalorder %s31, 0
      %p72 = por %p70, %p71
      %p73 = scmp.ne.s32.totalorder %s59, %s60
      %p74 = scmp.eq.s32.totalorder %s32, 3
      %p75 = por %p73, %p74
      %p77 = scmp.ne.s32.totalorder %s60, %s76
      %p78 = scmp.eq.s32.totalorder %s32, 0
      %p79 = por %p77, %p78
      %s80 = ssub.s32 %s33, %s45
      %s81 = ssub.s32 %s34, %s41
      %s82 = sor.u32 %s80, %s81
      %p83 = scmp.eq.s32.totalorder %s82, 0
      %s85 = sadd.s32 %s84, 1
      %s86 = scalar_select %p83, %s84, %s85
      %p89 = pneg %p83
      %p90 = scmp.eq.s32.totalorder %s26, 3
      %p91 = por %p89, %p90
      %p92 = scmp.ne.s32.totalorder %s84, %s87
      %p93 = scmp.eq.s32.totalorder %s26, 0
      %p94 = por %p92, %p93
      %p95 = scmp.ne.s32.totalorder %s84, %s87
      %p96 = scmp.eq.s32.totalorder %s31, 3
      %p97 = por %p95, %p96
      %p98 = scmp.ne.s32.totalorder %s87, %s88
      %p99 = scmp.eq.s32.totalorder %s31, 0
      %p100 = por %p98, %p99
      %p101 = scmp.ne.s32.totalorder %s87, %s88
      %p102 = scmp.eq.s32.totalorder %s32, 3
      %p103 = por %p101, %p102
      %p105 = scmp.ne.s32.totalorder %s88, %s104
      %p106 = scmp.eq.s32.totalorder %s32, 0
      %p107 = por %p105, %p106
      %s108 = sadd.s32 %s34, 1
      %p109 = scmp.lt.s32.totalorder %s108, 1
      %s110 = scalar_select %p109, %s108, 1
      %s111 = sadd.s32 %s41, 1
      %p112 = scmp.lt.s32.totalorder %s111, 1
      %s113 = scalar_select %p112, %s111, 1
      %s114 = ssub.s32 %s33, %s45
      %s115 = ssub.s32 %s110, %s113
      %s116 = sor.u32 %s114, %s115
      %p117 = scmp.eq.s32.totalorder %s116, 0
      %s119 = sadd.s32 %s118, 1
      %s120 = scalar_select %p117, %s118, %s119
      %p123 = pneg %p117
      %p124 = scmp.eq.s32.totalorder %s26, 3
      %p125 = por %p123, %p124
      %p126 = scmp.ne.s32.totalorder %s118, %s121
      %p127 = scmp.eq.s32.totalorder %s26, 0
      %p128 = por %p126, %p127
      %p129 = scmp.ne.s32.totalorder %s118, %s121
      %p130 = scmp.eq.s32.totalorder %s31, 3
      %p131 = por %p129, %p130
      %p132 = scmp.ne.s32.totalorder %s121, %s122
      %p133 = scmp.eq.s32.totalorder %s31, 0
      %p134 = por %p132, %p133
      %p135 = scmp.ne.s32.totalorder %s121, %s122
      %p136 = scmp.eq.s32.totalorder %s32, 3
      %p137 = por %p135, %p136
      %p139 = scmp.ne.s32.totalorder %s122, %s138
      %p140 = scmp.eq.s32.totalorder %s32, 0
      %p141 = por %p139, %p140
      %s143 = sadd.s32 %s142, 1
      %p146 = scmp.eq.s32.totalorder %s26, 3
      %p147 = scmp.ne.s32.totalorder %s142, %s144
      %p148 = scmp.eq.s32.totalorder %s26, 0
      %p149 = por %p147, %p148
      %p150 = scmp.ne.s32.totalorder %s142, %s144
      %p151 = scmp.eq.s32.totalorder %s31, 3
      %p152 = por %p150, %p151
      %p153 = scmp.ne.s32.totalorder %s144, %s145
      %p154 = scmp.eq.s32.totalorder %s31, 0
      %p155 = por %p153, %p154
      %p156 = scmp.ne.s32.totalorder %s144, %s145
      %p157 = scmp.eq.s32.totalorder %s32, 3
      %p158 = por %p156, %p157
      %p160 = scmp.ne.s32.totalorder %s145, %s159
      %p161 = scmp.eq.s32.totalorder %s32, 0
      %p162 = por %p160, %p161
      %s164 = sadd.s32 %s163, 1
      %p167 = scmp.eq.s32.totalorder %s26, 3
      %p168 = scmp.ne.s32.totalorder %s163, %s165
      %p169 = scmp.eq.s32.totalorder %s26, 0
      %p170 = por %p168, %p169
      %p171 = scmp.ne.s32.totalorder %s163, %s165
      %p172 = scmp.eq.s32.totalorder %s31, 3
      %p173 = por %p171, %p172
      %p174 = scmp.ne.s32.totalorder %s165, %s166
      %p175 = scmp.eq.s32.totalorder %s31, 0
      %p176 = por %p174, %p175
      %p177 = scmp.ne.s32.totalorder %s165, %s166
      %p178 = scmp.eq.s32.totalorder %s32, 3
      %p179 = por %p177, %p178
      %p181 = scmp.ne.s32.totalorder %s166, %s180
      %p182 = scmp.eq.s32.totalorder %s32, 0
      %p183 = por %p181, %p182
      %s185 = sadd.s32 %s184, 1
      %p188 = scmp.eq.s32.totalorder %s26, 3
      %p189 = scmp.ne.s32.totalorder %s184, %s186
      %p190 = scmp.eq.s32.totalorder %s26, 0
      %p191 = por %p189, %p190
      %p192 = scmp.ne.s32.totalorder %s184, %s186
      %p193 = scmp.eq.s32.totalorder %s31, 3
      %p194 = por %p192, %p193
      %p195 = scmp.ne.s32.totalorder %s186, %s187
      %p196 = scmp.eq.s32.totalorder %s31, 0
      %p197 = por %p195, %p196
      %p198 = scmp.ne.s32.totalorder %s186, %s187
      %p199 = scmp.eq.s32.totalorder %s32, 3
      %p200 = por %p198, %p199
      %p202 = scmp.ne.s32.totalorder %s187, %s201
      %p203 = scmp.eq.s32.totalorder %s32, 0
      %p204 = por %p202, %p203
      %s206 = sadd.s32 %s205, 1
      %p209 = scmp.eq.s32.totalorder %s26, 3
      %p210 = scmp.ne.s32.totalorder %s205, %s207
      %p211 = scmp.eq.s32.totalorder %s26, 0
      %p212 = por %p210, %p211
      %p213 = scmp.ne.s32.totalorder %s205, %s207
      %p214 = scmp.eq.s32.totalorder %s31, 3
      %p215 = por %p213, %p214
      %p216 = scmp.ne.s32.totalorder %s207, %s208
      %p217 = scmp.eq.s32.totalorder %s31, 0
      %p218 = por %p216, %p217
      %p219 = scmp.ne.s32.totalorder %s207, %s208
      %p220 = scmp.eq.s32.totalorder %s32, 3
      %p221 = por %p219, %p220
      %p223 = scmp.ne.s32.totalorder %s208, %s222
      %p224 = scmp.eq.s32.totalorder %s32, 0
      %p225 = por %p223, %p224
      %s227 = sadd.s32 %s226, 1
      %p230 = scmp.eq.s32.totalorder %s26, 3
      %p231 = scmp.ne.s32.totalorder %s226, %s228
      %p232 = scmp.eq.s32.totalorder %s26, 0
      %p233 = por %p231, %p232
      %p234 = scmp.ne.s32.totalorder %s226, %s228
      %p235 = scmp.eq.s32.totalorder %s31, 3
      %p236 = por %p234, %p235
      %p237 = scmp.ne.s32.totalorder %s228, %s229
      %p238 = scmp.eq.s32.totalorder %s31, 0
      %p239 = por %p237, %p238
      %p240 = scmp.ne.s32.totalorder %s228, %s229
      %p241 = scmp.eq.s32.totalorder %s32, 3
      %p242 = por %p240, %p241
      %p244 = scmp.ne.s32.totalorder %s229, %s243
      %p245 = scmp.eq.s32.totalorder %s32, 0
      %p246 = por %p244, %p245
      %s248 = sadd.s32 %s247, 1
      %p251 = scmp.eq.s32.totalorder %s26, 3
      %p252 = scmp.ne.s32.totalorder %s247, %s249
      %p253 = scmp.eq.s32.totalorder %s26, 0
      %p254 = por %p252, %p253
      %p255 = scmp.ne.s32.totalorder %s247, %s249
      %p256 = scmp.eq.s32.totalorder %s31, 3
      %p257 = por %p255, %p256
      %p258 = scmp.ne.s32.totalorder %s249, %s250
      %p259 = scmp.eq.s32.totalorder %s31, 0
      %p260 = por %p258, %p259
      %p261 = scmp.ne.s32.totalorder %s249, %s250
      %p262 = scmp.eq.s32.totalorder %s32, 3
      %p263 = por %p261, %p262
      %p265 = scmp.ne.s32.totalorder %s250, %s264
      %p266 = scmp.eq.s32.totalorder %s32, 0
      %p267 = por %p265, %p266
      %s268 = ssub.s32 %s33, %s45
      %s269 = ssub.s32 %s34, %s41
      %s270 = sor.u32 %s268, %s269
      %p271 = scmp.eq.s32.totalorder %s270, 0
      %s273 = sadd.s32 %s272, 1
      %s274 = scalar_select %p271, %s272, %s273
      %p277 = pneg %p271
      %p278 = scmp.eq.s32.totalorder %s26, 3
      %p279 = por %p277, %p278
      %p280 = scmp.ne.s32.totalorder %s272, %s275
      %p281 = scmp.eq.s32.totalorder %s26, 0
      %p282 = por %p280, %p281
      %p283 = scmp.ne.s32.totalorder %s272, %s275
      %p284 = scmp.eq.s32.totalorder %s31, 3
      %p285 = por %p283, %p284
      %p286 = scmp.ne.s32.totalorder %s275, %s276
      %p287 = scmp.eq.s32.totalorder %s31, 0
      %p288 = por %p286, %p287
      %p289 = scmp.ne.s32.totalorder %s275, %s276
      %p290 = scmp.eq.s32.totalorder %s32, 3
      %p291 = por %p289, %p290
      %p293 = scmp.ne.s32.totalorder %s276, %s292
      %p294 = scmp.eq.s32.totalorder %s32, 0
      %p295 = por %p293, %p294
      %s296 = ssub.s32 %s33, %s45
      %s297 = ssub.s32 %s34, %s41
      %s298 = sor.u32 %s296, %s297
      %p299 = scmp.eq.s32.totalorder %s298, 0
      %s301 = sadd.s32 %s300, 1
      %s302 = scalar_select %p299, %s300, %s301
      %p305 = pneg %p299
      %p306 = scmp.eq.s32.totalorder %s26, 3
      %p307 = por %p305, %p306
      %p308 = scmp.ne.s32.totalorder %s300, %s303
      %p309 = scmp.eq.s32.totalorder %s26, 0
      %p310 = por %p308, %p309
      %p311 = scmp.ne.s32.totalorder %s300, %s303
      %p312 = scmp.eq.s32.totalorder %s31, 3
      %p313 = por %p311, %p312
      %p314 = scmp.ne.s32.totalorder %s303, %s304
      %p315 = scmp.eq.s32.totalorder %s31, 0
      %p316 = por %p314, %p315
      %p317 = scmp.ne.s32.totalorder %s303, %s304
      %p318 = scmp.eq.s32.totalorder %s32, 3
      %p319 = por %p317, %p318
      %p321 = scmp.ne.s32.totalorder %s304, %s320
      %p322 = scmp.eq.s32.totalorder %s32, 0
      %p323 = por %p321, %p322
      %p324 = scmp.le.s32.totalorder 1, %s26
      %p325 = scmp.lt.s32.totalorder %s26, 5
      %p326 = pnand %p324, %p325
      %p327 = pneg %p326
      // Predicated region
      $region9: #{tpu_custom_call.1} parent=5 // pred_check
        _
      $region10: #{tpu_custom_call.1} parent=5 // pred_check_branch
        %329 = sbr.rel (%p326) target = $region12
      $region11: #{tpu_custom_call.1} parent=5 // pred_region
        %s330 = ssub.s32 %s26, 1
        // Predicated region
        $region13: #{tpu_custom_call.1} parent=11 // pred_check
          %p331 = pneg %p155
        $region14: #{tpu_custom_call.1} parent=11 // pred_check_branch
          %333 = sbr.rel (%p331) target = $region16
        $region15: #{tpu_custom_call.1} parent=11 // pred_region
          _
        $region16: #{tpu_custom_call.1} parent=11 // pred_fallthru
          _
        // Predicated region
        $region17: #{tpu_custom_call.1} parent=11 // pred_check
          %p334 = pneg %p176
        $region18: #{tpu_custom_call.1} parent=11 // pred_check_branch
          %336 = sbr.rel (%p334) target = $region20
        $region19: #{tpu_custom_call.1} parent=11 // pred_region
          _
        $region20: #{tpu_custom_call.1} parent=11 // pred_fallthru
          _
        // Predicated region
        $region21: #{tpu_custom_call.1} parent=11 // pred_check
          %p337 = pneg %p197
        $region22: #{tpu_custom_call.1} parent=11 // pred_check_branch
          %339 = sbr.rel (%p337) target = $region24
        $region23: #{tpu_custom_call.1} parent=11 // pred_region
          _
        $region24: #{tpu_custom_call.1} parent=11 // pred_fallthru
          _
        // Predicated region
        $region25: #{tpu_custom_call.1} parent=11 // pred_check
          %p340 = pneg %p218
        $region26: #{tpu_custom_call.1} parent=11 // pred_check_branch
          %342 = sbr.rel (%p340) target = $region28
        $region27: #{tpu_custom_call.1} parent=11 // pred_region
          _
        $region28: #{tpu_custom_call.1} parent=11 // pred_fallthru
          _
        // Predicated region
        $region29: #{tpu_custom_call.1} parent=11 // pred_check
          %p343 = pneg %p239
        $region30: #{tpu_custom_call.1} parent=11 // pred_check_branch
          %345 = sbr.rel (%p343) target = $region32
        $region31: #{tpu_custom_call.1} parent=11 // pred_region
          _
        $region32: #{tpu_custom_call.1} parent=11 // pred_fallthru
          _
        // Predicated region
        $region33: #{tpu_custom_call.1} parent=11 // pred_check
          %p346 = pneg %p260
        $region34: #{tpu_custom_call.1} parent=11 // pred_check_branch
          %348 = sbr.rel (%p346) target = $region36
        $region35: #{tpu_custom_call.1} parent=11 // pred_region
          _
        $region36: #{tpu_custom_call.1} parent=11 // pred_fallthru
          _
      $region12: #{tpu_custom_call.1} parent=5 // pred_fallthru
        _
      %p349 = scmp.lt.s32.totalorder %s26, 4
      // Predicated region
      $region37: #{tpu_custom_call.1} parent=5 // pred_check
        %p350 = pneg %p349
      $region38: #{tpu_custom_call.1} parent=5 // pred_check_branch
        %352 = sbr.rel (%p350) target = $region40
      $region39: #{tpu_custom_call.1} parent=5 // pred_region
        // Predicated region
        $region41: #{tpu_custom_call.1} parent=39 // pred_check
          %p353 = pneg %p66
        $region42: #{tpu_custom_call.1} parent=39 // pred_check_branch
          %355 = sbr.rel (%p353) target = $region44
        $region43: #{tpu_custom_call.1} parent=39 // pred_region
          %s356 = ssub.s32 %s34, 1
          %p357 = scmp.gt.s32.totalorder %s356, 0
          %s358 = scalar_select %p357, %s356, 0
          %p359 = scmp.lt.s32.totalorder %s33, 1
          %s360 = scalar_select %p359, %s33, 1
          %p361 = scmp.lt.s32.totalorder %s358, 1
          %s362 = scalar_select %p361, %s358, 1
          %s363 = smul.addr %s360, 2
          %s364 = sadd.s32 %s362, %s363
          %s365 = smul.addr %s364, 4
          %s366 = scalar_lea.vmem %s0, %s365
          %s367 = ssub.s32 %s34, 1
          %p368 = scmp.gt.s32.totalorder %s367, 0
          %s369 = scalar_select %p368, %s367, 0
        $region44: #{tpu_custom_call.1} parent=39 // pred_fallthru
          _
        // Predicated region
        $region45: #{tpu_custom_call.1} parent=39 // pred_check
          %p370 = pneg %p94
        $region46: #{tpu_custom_call.1} parent=39 // pred_check_branch
          %372 = sbr.rel (%p370) target = $region48
        $region47: #{tpu_custom_call.1} parent=39 // pred_region
          %p373 = scmp.lt.s32.totalorder %s33, 1
          %s374 = scalar_select %p373, %s33, 1
          %p375 = scmp.lt.s32.totalorder %s34, 1
          %s376 = scalar_select %p375, %s34, 1
          %s377 = smul.addr %s374, 2
          %s378 = sadd.s32 %s376, %s377
          %s379 = smul.addr %s378, 4
          %s380 = scalar_lea.vmem %s1, %s379
        $region48: #{tpu_custom_call.1} parent=39 // pred_fallthru
          _
        // Predicated region
        $region49: #{tpu_custom_call.1} parent=39 // pred_check
          %p381 = pneg %p128
        $region50: #{tpu_custom_call.1} parent=39 // pred_check_branch
          %383 = sbr.rel (%p381) target = $region52
        $region51: #{tpu_custom_call.1} parent=39 // pred_region
          %s384 = sand.u32 %s118, 1
          %s385 = scalar_lea.sflag [#allocation4], %s384
          %s386 = sand.u32 %s118, 1
          %s387 = smul.addr %s386, 4
          %s388 = scalar_lea.vmem [#allocation3], %s387
          %s389 = sadd.s32 %s34, 1
          %p390 = scmp.lt.s32.totalorder %s389, 1
          %s391 = scalar_select %p390, %s389, 1
          %s393 = ssub.s32 64, 64
          %394 = vsyncadd %s385, %s393
          %s395 = smul.addr %s33, 2
          %s396 = sadd.s32 %s391, %s395
          %s397 = smul.addr %s396, 64
          %s398 = scalar_lea.hbm %s2, %s397
          %s400 = sshll.u32 %s388, 4
          %s401 = int_to_ptr.vmem [resolvable:$true] %s400
          %403 = dma.hbm_to_vmem [thread:$0]  %s398, 64, %s401, %s385
        $region52: #{tpu_custom_call.1} parent=39 // pred_fallthru
          _
      $region40: #{tpu_custom_call.1} parent=5 // pred_fallthru
        _
      %p404 = scmp.le.s32.totalorder 1, %s26
      %p405 = scmp.lt.s32.totalorder %s26, 5
      %p406 = pnand %p404, %p405
      %p407 = pneg %p406
      // Predicated region
      $region53: #{tpu_custom_call.1} parent=5 // pred_check
        _
      $region54: #{tpu_custom_call.1} parent=5 // pred_check_branch
        %409 = sbr.rel (%p406) target = $region56
      $region55: #{tpu_custom_call.1} parent=5 // pred_region
        %s410 = ssub.s32 %s26, 1
        %s411 = sand.u32 %s121, 1
        %s412 = scalar_lea.sflag [#allocation4], %s411
        %s413 = sand.u32 %s121, 1
        %s414 = smul.addr %s413, 4
        %s415 = scalar_lea.vmem [#allocation3], %s414
        // Predicated region
        $region57: #{tpu_custom_call.1} parent=55 // pred_check
          %p416 = pneg %p134
        $region58: #{tpu_custom_call.1} parent=55 // pred_check_branch
          %418 = sbr.rel (%p416) target = $region60
        $region59: #{tpu_custom_call.1} parent=55 // pred_region
          %419 = dma.done %s412, 64
        $region60: #{tpu_custom_call.1} parent=55 // pred_fallthru
          _
        %s420 = ssub.s32 %s36, 1
        %p421 = scmp.gt.s32.totalorder %s420, 0
        %s422 = scalar_select %p421, %s420, 0
        %p423 = scmp.lt.s32.totalorder %s35, 1
        %s424 = scalar_select %p423, %s35, 1
        %p425 = scmp.lt.s32.totalorder %s422, 1
        %s426 = scalar_select %p425, %s422, 1
        %s427 = smul.addr %s424, 2
        %s428 = sadd.s32 %s426, %s427
        %s429 = smul.addr %s428, 4
        %s430 = scalar_lea.vmem %s0, %s429
        %p431 = pneg %p72
        %p432 = pneg %p69
        %p433 = scmp.lt.s32.totalorder %s35, 1
        %s434 = scalar_select %p433, %s35, 1
        %p435 = scmp.lt.s32.totalorder %s36, 1
        %s436 = scalar_select %p435, %s36, 1
        %s437 = smul.addr %s434, 2
        %s438 = sadd.s32 %s436, %s437
        %s439 = smul.addr %s438, 4
        %s440 = scalar_lea.vmem %s1, %s439
        %p441 = pneg %p100
        %p442 = pneg %p97
        %s443 = sand.u32 %s121, 1
        %s444 = scalar_lea.sflag [#allocation4], %s443
        %s445 = sand.u32 %s121, 1
        %s446 = smul.addr %s445, 4
        %s447 = scalar_lea.vmem [#allocation3], %s446
        %p448 = pneg %p134
        %p449 = pneg %p131
        %p450 = pneg %p155
        %p451 = pneg %p152
        %p452 = pneg %p176
        %p453 = pneg %p173
        %p454 = pneg %p197
        %p455 = pneg %p194
        %p456 = pneg %p218
        %p457 = pneg %p215
        %p458 = pneg %p239
        %p459 = pneg %p236
        %p460 = pneg %p260
        %p461 = pneg %p257
        %p462 = pneg %p288
        %p463 = pneg %p285
        %s464 = sand.u32 %s275, 1
        %s465 = scalar_lea.sflag [#allocation5], %s464
        %s466 = sand.u32 %s275, 1
        %s467 = smul.addr %s466, 2
        %s468 = scalar_lea.vmem [#allocation6], %s467
        %p469 = pneg %p316
        %p470 = pneg %p313
        %s471 = sand.u32 %s303, 1
        %s472 = scalar_lea.sflag [#allocation8], %s471
        %s473 = sand.u32 %s303, 1
        %s474 = smul.addr %s473, 8
        %s475 = scalar_lea.vmem [#allocation7], %s474
        %s476 = ssub.s32 %s36, 1
        %p477 = scmp.gt.s32.totalorder %s476, 0
        %s478 = scalar_select %p477, %s476, 0
        %p479 = scmp.lt.s32.totalorder %s35, 1
        %s480 = scalar_select %p479, %s35, 1
        %p481 = scmp.lt.s32.totalorder %s478, 1
        %s482 = scalar_select %p481, %s478, 1
        %s483 = smul.addr %s480, 2
        %s484 = sadd.s32 %s482, %s483
        %s485 = smul.addr %s484, 4
        %s486 = scalar_lea.vmem %s0, %s485
        %s487 = ssub.s32 %s36, 1
        %p488 = scmp.gt.s32.totalorder %s487, 0
        %s489 = scalar_select %p488, %s487, 0
        %p490 = scmp.lt.s32.totalorder %s35, 1
        %s491 = scalar_select %p490, %s35, 1
        %p492 = scmp.lt.s32.totalorder %s36, 1
        %s493 = scalar_select %p492, %s36, 1
        %s494 = smul.addr %s491, 2
        %s495 = sadd.s32 %s493, %s494
        %s496 = smul.addr %s495, 4
        %s497 = scalar_lea.vmem %s1, %s496
        %s498 = sadd.s32 %s36, 1
        %p499 = scmp.lt.s32.totalorder %s498, 1
        %s500 = scalar_select %p499, %s498, 1
        %v501 = vlaneseq
        %v502 = vand.u32 %v501, 127
        %vm503 = vcmp.lt.s32.totalorder %v502, 0
        %v504 = vsub.s32 0, %v502
        %v505 = vsel %vm503, %v504, %v502
        %v506 = vshrl.u32 %v505, 4
        %v507 = vand.u32 %v505, 15
        %v508 = vsub.s32 0, %v507
        %v509 = vsel %vm503, %v508, %v507
        %vm510 = vcmp.ne.s32.totalorder %v509, 0
        %vm511 = vcmp.lt.s32.totalorder %v509, 0
        %vm512 = vmand %vm511, %vm510
        %v513 = vadd.s32 %v509, 16
        %v514 = vsel %vm512, %v513, %v509
        %vm515 = vcmp.ne.s32.totalorder %v514, 0
        %vm516 = vcmp.ne.s32.totalorder %v514, 15
        %vm517 = vcmp.ge.s32.totalorder %v502, 16
        %vm518 = vcmp.lt.s32.totalorder %v502, 112
        %v519 = vld [vmem:[%s3] sm:$0xff]
        %v520 = vld [vmem:[%s3 + $0x8] sm:$0x3]
        %v521 = vld [vmem:[%s4] sm:$0xff]
        %v522 = vld [vmem:[%s4 + $0x8] sm:$0x3]
        %v523 = vld [vmem:[%s497] sm:$0xf]
        %525 = vset.pattern.permute.xlu0 0
        %526 = vperm.xlu0 %525, %v521
        %v527 = vpop.permute.xlu0 %526
        %530 = vset.pattern.permute.xlu0 0
        %531 = vperm.xlu0 %530, %v522
        %v532 = vpop.permute.xlu0 %531
        %vm534 = vcmask 31744
        %v536 = vsel %vm534, %v519, 0
        %v539 = vsel %vm534, %v520, 0
        %vm541 = vcmask 1043456
        %v543 = vsel %vm541, %v523, 0
        %545 = vmatprep.subr.mxu0 0.0
        %546 = vmatpush1.msra.mxu0 %v543
        %547 = vmatprep.subr.mxu0 0.0
        %548 = vmatpush1.msra.mxu0 0.0
        %549 = vmatprep.subr.mxu0 0.0
        %550 = vmatpush1.msra.mxu0 0.0
        %551 = vmatprep.subr.mxu0 0.0
        %552 = vmatpush1.msra.mxu0 0.0
        %553 = vmatprep.subr.mxu0 0.0
        %554 = vmatpush1.msra.mxu0 0.0
        %555 = vmatprep.subr.mxu0 0.0
        %556 = vmatpush1.msra.mxu0 0.0
        %557 = vmatprep.subr.mxu0 0.0
        %558 = vmatpush1.msra.mxu0 0.0
        %559 = vmatprep.subr.mxu0 0.0
        %560 = vmatpush1.msra.mxu0 0.0
        %561 = vmatprep.subr.mxu0 0.0
        %562 = vmatpush1.msra.mxu0 0.0
        %563 = vmatprep.subr.mxu0 0.0
        %564 = vmatpush1.msra.mxu0 0.0
        %565 = vmatprep.subr.mxu0 0.0
        %566 = vmatpush1.msra.mxu0 0.0
        %567 = vmatprep.subr.mxu0 0.0
        %568 = vmatpush1.msra.mxu0 0.0
        %569 = vmatprep.subr.mxu0 0.0
        %570 = vmatpush1.msra.mxu0 0.0
        %571 = vmatprep.subr.mxu0 0.0
        %572 = vmatpush1.msra.mxu0 0.0
        %573 = vmatprep.subr.mxu0 0.0
        %574 = vmatpush1.msra.mxu0 0.0
        %575 = vmatprep.subr.mxu0 0.0
        %576 = vmatpush1.msra.mxu0 0.0
        %577 = vmatprep.subr.mxu0 0.0
        %578 = vmatpush1.msra.mxu0 0.0
        %579 = vmatprep.subr.mxu0 0.0
        %580 = vmatpush1.msra.mxu0 0.0
        %581 = vmatprep.subr.mxu0 0.0
        %582 = vmatpush1.msra.mxu0 0.0
        %583 = vmatprep.subr.mxu0 0.0
        %584 = vmatpush1.msra.mxu0 0.0
        %585 = vmatprep.subr.mxu0 0.0
        %586 = vmatpush1.msra.mxu0 0.0
        %587 = vmatprep.subr.mxu0 0.0
        %588 = vmatpush1.msra.mxu0 0.0
        %589 = vmatprep.subr.mxu0 0.0
        %590 = vmatpush1.msra.mxu0 0.0
        %591 = vmatprep.subr.mxu0 0.0
        %592 = vmatpush1.msra.mxu0 0.0
        %593 = vmatprep.subr.mxu0 0.0
        %594 = vmatpush1.msra.mxu0 0.0
        %595 = vmatprep.subr.mxu0 0.0
        %596 = vmatpush1.msra.mxu0 0.0
        %597 = vmatprep.subr.mxu0 0.0
        %598 = vmatpush1.msra.mxu0 0.0
        %599 = vmatprep.subr.mxu0 0.0
        %600 = vmatpush1.msra.mxu0 0.0
        %601 = vmatprep.subr.mxu0 0.0
        %602 = vmatpush1.msra.mxu0 0.0
        %603 = vmatprep.subr.mxu0 0.0
        %604 = vmatpush1.msra.mxu0 0.0
        %605 = vmatprep.subr.mxu0 0.0
        %606 = vmatpush1.msra.mxu0 0.0
        %607 = vmatprep.subr.mxu0 0.0
        %608 = vmatpush1.msra.mxu0 0.0
        %609 = vmatprep.mubr.f32.mxu0 0.0
        %610 = vmatmul.mubr.f32.gmra.mrb[0].mxu0 %v536
        %v611 = vpop.f32.mrb[0].mxu0
        %v612 = vadd.f32 %v527, %v611
        %v613 = vpop.f32.mrb[0].mxu0
        %614 = vmatprep.mubr.f32.mxu0 0.0
        %615 = vmatmul.mubr.f32.gmra.mrb[0].mxu0 %v539
        %v616 = vpop.f32.mrb[0].mxu0
        %v617 = vadd.f32 %v532, %v616
        %v618 = vpop.f32.mrb[0].mxu0
        %619 = vdwg.mxu0
        %v620 = vmax.f32 %v617, 0.0
        %621 = vst [vmem:[%s468] sm:$0x3] %v620
        %v622 = vld [vmem:[%s486] sm:$0xf]
        %v624 = vsel %vm541, %v622, 0
        %626 = vmatprep.subr.mxu0 0.0
        %627 = vmatpush1.msra.mxu0 %v624
        %628 = vmatprep.subr.mxu0 0.0
        %629 = vmatpush1.msra.mxu0 0.0
        %630 = vmatprep.subr.mxu0 0.0
        %631 = vmatpush1.msra.mxu0 0.0
        %632 = vmatprep.subr.mxu0 0.0
        %633 = vmatpush1.msra.mxu0 0.0
        %634 = vmatprep.subr.mxu0 0.0
        %635 = vmatpush1.msra.mxu0 0.0
        %636 = vmatprep.subr.mxu0 0.0
        %637 = vmatpush1.msra.mxu0 0.0
        %638 = vmatprep.subr.mxu0 0.0
        %639 = vmatpush1.msra.mxu0 0.0
        %640 = vmatprep.subr.mxu0 0.0
        %641 = vmatpush1.msra.mxu0 0.0
        %642 = vmatprep.subr.mxu0 0.0
        %643 = vmatpush1.msra.mxu0 0.0
        %644 = vmatprep.subr.mxu0 0.0
        %645 = vmatpush1.msra.mxu0 0.0
        %646 = vmatprep.subr.mxu0 0.0
        %647 = vmatpush1.msra.mxu0 0.0
        %648 = vmatprep.subr.mxu0 0.0
        %649 = vmatpush1.msra.mxu0 0.0
        %650 = vmatprep.subr.mxu0 0.0
        %651 = vmatpush1.msra.mxu0 0.0
        %652 = vmatprep.subr.mxu0 0.0
        %653 = vmatpush1.msra.mxu0 0.0
        %654 = vmatprep.subr.mxu0 0.0
        %655 = vmatpush1.msra.mxu0 0.0
        %656 = vmatprep.subr.mxu0 0.0
        %657 = vmatpush1.msra.mxu0 0.0
        %658 = vmatprep.subr.mxu0 0.0
        %659 = vmatpush1.msra.mxu0 0.0
        %660 = vmatprep.subr.mxu0 0.0
        %661 = vmatpush1.msra.mxu0 0.0
        %662 = vmatprep.subr.mxu0 0.0
        %663 = vmatpush1.msra.mxu0 0.0
        %664 = vmatprep.subr.mxu0 0.0
        %665 = vmatpush1.msra.mxu0 0.0
        %666 = vmatprep.subr.mxu0 0.0
        %667 = vmatpush1.msra.mxu0 0.0
        %668 = vmatprep.subr.mxu0 0.0
        %669 = vmatpush1.msra.mxu0 0.0
        %670 = vmatprep.subr.mxu0 0.0
        %671 = vmatpush1.msra.mxu0 0.0
        %672 = vmatprep.subr.mxu0 0.0
        %673 = vmatpush1.msra.mxu0 0.0
        %674 = vmatprep.subr.mxu0 0.0
        %675 = vmatpush1.msra.mxu0 0.0
        %676 = vmatprep.subr.mxu0 0.0
        %677 = vmatpush1.msra.mxu0 0.0
        %678 = vmatprep.subr.mxu0 0.0
        %679 = vmatpush1.msra.mxu0 0.0
        %680 = vmatprep.subr.mxu0 0.0
        %681 = vmatpush1.msra.mxu0 0.0
        %682 = vmatprep.subr.mxu0 0.0
        %683 = vmatpush1.msra.mxu0 0.0
        %684 = vmatprep.subr.mxu0 0.0
        %685 = vmatpush1.msra.mxu0 0.0
        %686 = vmatprep.subr.mxu0 0.0
        %687 = vmatpush1.msra.mxu0 0.0
        %688 = vmatprep.subr.mxu0 0.0
        %689 = vmatpush1.msra.mxu0 0.0
        %690 = vmatprep.mubr.f32.mxu0 0.0
        %691 = vmatmul.mubr.f32.gmra.mrb[0].mxu0 %v536
        %v692 = vpop.f32.mrb[0].mxu0
        %v693 = vadd.f32 %v527, %v692
        %v694 = vpop.f32.mrb[0].mxu0
        %695 = vdwg.mxu0
        %v696 = vld [vmem:[%s415] sm:$0xf]
        %v698 = vsel %vm541, %v696, 0
        %700 = vmatprep.subr.mxu0 0.0
        %701 = vmatpush1.msra.mxu0 %v698
        %702 = vmatprep.subr.mxu0 0.0
        %703 = vmatpush1.msra.mxu0 0.0
        %704 = vmatprep.subr.mxu0 0.0
        %705 = vmatpush1.msra.mxu0 0.0
        %706 = vmatprep.subr.mxu0 0.0
        %707 = vmatpush1.msra.mxu0 0.0
        %708 = vmatprep.subr.mxu0 0.0
        %709 = vmatpush1.msra.mxu0 0.0
        %710 = vmatprep.subr.mxu0 0.0
        %711 = vmatpush1.msra.mxu0 0.0
        %712 = vmatprep.subr.mxu0 0.0
        %713 = vmatpush1.msra.mxu0 0.0
        %714 = vmatprep.subr.mxu0 0.0
        %715 = vmatpush1.msra.mxu0 0.0
        %716 = vmatprep.subr.mxu0 0.0
        %717 = vmatpush1.msra.mxu0 0.0
        %718 = vmatprep.subr.mxu0 0.0
        %719 = vmatpush1.msra.mxu0 0.0
        %720 = vmatprep.subr.mxu0 0.0
        %721 = vmatpush1.msra.mxu0 0.0
        %722 = vmatprep.subr.mxu0 0.0
        %723 = vmatpush1.msra.mxu0 0.0
        %724 = vmatprep.subr.mxu0 0.0
        %725 = vmatpush1.msra.mxu0 0.0
        %726 = vmatprep.subr.mxu0 0.0
        %727 = vmatpush1.msra.mxu0 0.0
        %728 = vmatprep.subr.mxu0 0.0
        %729 = vmatpush1.msra.mxu0 0.0
        %730 = vmatprep.subr.mxu0 0.0
        %731 = vmatpush1.msra.mxu0 0.0
        %732 = vmatprep.subr.mxu0 0.0
        %733 = vmatpush1.msra.mxu0 0.0
        %734 = vmatprep.subr.mxu0 0.0
        %735 = vmatpush1.msra.mxu0 0.0
        %736 = vmatprep.subr.mxu0 0.0
        %737 = vmatpush1.msra.mxu0 0.0
        %738 = vmatprep.subr.mxu0 0.0
        %739 = vmatpush1.msra.mxu0 0.0
        %740 = vmatprep.subr.mxu0 0.0
        %741 = vmatpush1.msra.mxu0 0.0
        %742 = vmatprep.subr.mxu0 0.0
        %743 = vmatpush1.msra.mxu0 0.0
        %744 = vmatprep.subr.mxu0 0.0
        %745 = vmatpush1.msra.mxu0 0.0
        %746 = vmatprep.subr.mxu0 0.0
        %747 = vmatpush1.msra.mxu0 0.0
        %748 = vmatprep.subr.mxu0 0.0
        %749 = vmatpush1.msra.mxu0 0.0
        %750 = vmatprep.subr.mxu0 0.0
        %751 = vmatpush1.msra.mxu0 0.0
        %752 = vmatprep.subr.mxu0 0.0
        %753 = vmatpush1.msra.mxu0 0.0
        %754 = vmatprep.subr.mxu0 0.0
        %755 = vmatpush1.msra.mxu0 0.0
        %756 = vmatprep.subr.mxu0 0.0
        %757 = vmatpush1.msra.mxu0 0.0
        %758 = vmatprep.subr.mxu0 0.0
        %759 = vmatpush1.msra.mxu0 0.0
        %760 = vmatprep.subr.mxu0 0.0
        %761 = vmatpush1.msra.mxu0 0.0
        %762 = vmatprep.subr.mxu0 0.0
        %763 = vmatpush1.msra.mxu0 0.0
        %764 = vmatprep.mubr.f32.mxu0 0.0
        %765 = vmatmul.mubr.f32.gmra.mrb[0].mxu0 %v536
        %v766 = vpop.f32.mrb[0].mxu0
        %v767 = vadd.f32 %v527, %v766
        %v768 = vpop.f32.mrb[0].mxu0
        %769 = vdwg.mxu0
        %p770 = scmp.gt.s32.totalorder %s36, 0
        %771 = vrot.lane.b32.xlu0 %v693, 16
        %v772 = vpop.permute.xlu0 %771
        %s773 = scalar_select %p770, 1, 0
        %v774 = vstv %s773
        %vm775 = vcmp.eq.s32.totalorder %v774, 1
        %v776 = vsel %vm775, %v772, 0.0
        %p777 = scmp.lt.s32.totalorder %s36, 1
        %778 = vrot.lane.b32.xlu0 %v767, 112
        %v779 = vpop.permute.xlu0 %778
        %s780 = scalar_select %p777, 1, 0
        %v781 = vstv %s780
        %vm782 = vcmp.eq.s32.totalorder %v781, 1
        %v783 = vsel %vm782, %v779, 0.0
        %784 = vrot.lane.b32.xlu0 %v612, 16
        %v785 = vpop.permute.xlu0 %784
        %v786 = vsel %vm517, 1, 0
        %vm787 = vcmp.eq.s32.totalorder %v786, 1
        %v788 = vsel %vm787, %v785, %v776
        %789 = vrot.lane.b32.xlu0 %v612, 112
        %v790 = vpop.permute.xlu0 %789
        %v791 = vsel %vm518, 1, 0
        %vm792 = vcmp.eq.s32.totalorder %v791, 1
        %v793 = vsel %vm792, %v790, %v783
        %v794 = vld [vmem:[%s5] sm:$0xff]
        %795 = vrot.lane.b32.xlu0 %v788, 1
        %v796 = vpop.permute.xlu0 %795
        %v797 = vsel %vm515, 1, 0
        %vm798 = vcmp.eq.s32.totalorder %v797, 1
        %v799 = vsel %vm798, %v796, 0.0
        %800 = vst [vmem:[#allocation2] sm:$0xff] %v799
        %801 = vst [vmem:[#allocation2 + $0x8] sm:$0xff] %v788
        %802 = vrot.lane.b32.xlu0 %v788, 127
        %v803 = vpop.permute.xlu0 %802
        %v804 = vsel %vm516, 1, 0
        %vm805 = vcmp.eq.s32.totalorder %v804, 1
        %v806 = vsel %vm805, %v803, 0.0
        %807 = vst [vmem:[#allocation2 + $0x10] sm:$0xff] %v806
        %v808 = vld [vmem:[#allocation2] sm:$0xff]
        %v809 = vld [vmem:[#allocation2 + $0x8] sm:$0xff]
        %v810 = vld [vmem:[#allocation2 + $0x10] sm:$0xff]
        %s811 = scalar_lea.vmem %s5, 8
        %v812 = vld [vmem:[%s811] sm:$0xff]
        %813 = vrot.lane.b32.xlu0 %v612, 1
        %v814 = vpop.permute.xlu0 %813
        %v815 = vsel %vm798, %v814, 0.0
        %816 = vst [vmem:[#allocation2] sm:$0xff] %v815
        %817 = vst [vmem:[#allocation2 + $0x8] sm:$0xff] %v612
        %818 = vrot.lane.b32.xlu0 %v612, 127
        %v819 = vpop.permute.xlu0 %818
        %v820 = vsel %vm805, %v819, 0.0
        %821 = vst [vmem:[#allocation2 + $0x10] sm:$0xff] %v820
        %v822 = vld [vmem:[#allocation2] sm:$0xff]
        %v823 = vld [vmem:[#allocation2 + $0x8] sm:$0xff]
        %v824 = vld [vmem:[#allocation2 + $0x10] sm:$0xff]
        %vm825 = vcmask 195584
        %v827 = vsel %vm825, %v812, 0
        %829 = vmatprep.subr.mxu0 0.0
        %830 = vmatpush1.msra.mxu0 %v822
        %831 = vmatprep.subr.mxu0 0.0
        %832 = vmatpush1.msra.mxu0 %v823
        %833 = vmatprep.subr.mxu0 0.0
        %834 = vmatpush1.msra.mxu0 %v824
        %835 = vmatprep.subr.mxu0 0.0
        %836 = vmatpush1.msra.mxu0 0.0
        %837 = vmatprep.subr.mxu0 0.0
        %838 = vmatpush1.msra.mxu0 0.0
        %839 = vmatprep.subr.mxu0 0.0
        %840 = vmatpush1.msra.mxu0 0.0
        %841 = vmatprep.subr.mxu0 0.0
        %842 = vmatpush1.msra.mxu0 0.0
        %843 = vmatprep.subr.mxu0 0.0
        %844 = vmatpush1.msra.mxu0 0.0
        %845 = vmatprep.subr.mxu0 0.0
        %846 = vmatpush1.msra.mxu0 0.0
        %847 = vmatprep.subr.mxu0 0.0
        %848 = vmatpush1.msra.mxu0 0.0
        %849 = vmatprep.subr.mxu0 0.0
        %850 = vmatpush1.msra.mxu0 0.0
        %851 = vmatprep.subr.mxu0 0.0
        %852 = vmatpush1.msra.mxu0 0.0
        %853 = vmatprep.subr.mxu0 0.0
        %854 = vmatpush1.msra.mxu0 0.0
        %855 = vmatprep.subr.mxu0 0.0
        %856 = vmatpush1.msra.mxu0 0.0
        %857 = vmatprep.subr.mxu0 0.0
        %858 = vmatpush1.msra.mxu0 0.0
        %859 = vmatprep.subr.mxu0 0.0
        %860 = vmatpush1.msra.mxu0 0.0
        %861 = vmatprep.subr.mxu0 0.0
        %862 = vmatpush1.msra.mxu0 0.0
        %863 = vmatprep.subr.mxu0 0.0
        %864 = vmatpush1.msra.mxu0 0.0
        %865 = vmatprep.subr.mxu0 0.0
        %866 = vmatpush1.msra.mxu0 0.0
        %867 = vmatprep.subr.mxu0 0.0
        %868 = vmatpush1.msra.mxu0 0.0
        %869 = vmatprep.subr.mxu0 0.0
        %870 = vmatpush1.msra.mxu0 0.0
        %871 = vmatprep.subr.mxu0 0.0
        %872 = vmatpush1.msra.mxu0 0.0
        %873 = vmatprep.subr.mxu0 0.0
        %874 = vmatpush1.msra.mxu0 0.0
        %875 = vmatprep.subr.mxu0 0.0
        %876 = vmatpush1.msra.mxu0 0.0
        %877 = vmatprep.subr.mxu0 0.0
        %878 = vmatpush1.msra.mxu0 0.0
        %879 = vmatprep.subr.mxu0 0.0
        %880 = vmatpush1.msra.mxu0 0.0
        %881 = vmatprep.subr.mxu0 0.0
        %882 = vmatpush1.msra.mxu0 0.0
        %883 = vmatprep.subr.mxu0 0.0
        %884 = vmatpush1.msra.mxu0 0.0
        %885 = vmatprep.subr.mxu0 0.0
        %886 = vmatpush1.msra.mxu0 0.0
        %887 = vmatprep.subr.mxu0 0.0
        %888 = vmatpush1.msra.mxu0 0.0
        %889 = vmatprep.subr.mxu0 0.0
        %890 = vmatpush1.msra.mxu0 0.0
        %891 = vmatprep.subr.mxu0 0.0
        %892 = vmatpush1.msra.mxu0 0.0
        %893 = vmatprep.mubr.f32.mxu0 0.0
        %894 = vmatmul.mubr.f32.gmra.mrb[0].mxu0 %v827
        %v895 = vpop.f32.mrb[0].mxu0
        %v896 = vadd.f32 0.0, %v895
        %v897 = vpop.f32.mrb[0].mxu0
        %898 = vdwg.mxu0
        %v900 = vsel %vm825, %v794, 0
        %902 = vmatprep.subr.mxu0 0.0
        %903 = vmatpush1.msra.mxu0 %v808
        %904 = vmatprep.subr.mxu0 0.0
        %905 = vmatpush1.msra.mxu0 %v809
        %906 = vmatprep.subr.mxu0 0.0
        %907 = vmatpush1.msra.mxu0 %v810
        %908 = vmatprep.subr.mxu0 0.0
        %909 = vmatpush1.msra.mxu0 0.0
        %910 = vmatprep.subr.mxu0 0.0
        %911 = vmatpush1.msra.mxu0 0.0
        %912 = vmatprep.subr.mxu0 0.0
        %913 = vmatpush1.msra.mxu0 0.0
        %914 = vmatprep.subr.mxu0 0.0
        %915 = vmatpush1.msra.mxu0 0.0
        %916 = vmatprep.subr.mxu0 0.0
        %917 = vmatpush1.msra.mxu0 0.0
        %918 = vmatprep.subr.mxu0 0.0
        %919 = vmatpush1.msra.mxu0 0.0
        %920 = vmatprep.subr.mxu0 0.0
        %921 = vmatpush1.msra.mxu0 0.0
        %922 = vmatprep.subr.mxu0 0.0
        %923 = vmatpush1.msra.mxu0 0.0
        %924 = vmatprep.subr.mxu0 0.0
        %925 = vmatpush1.msra.mxu0 0.0
        %926 = vmatprep.subr.mxu0 0.0
        %927 = vmatpush1.msra.mxu0 0.0
        %928 = vmatprep.subr.mxu0 0.0
        %929 = vmatpush1.msra.mxu0 0.0
        %930 = vmatprep.subr.mxu0 0.0
        %931 = vmatpush1.msra.mxu0 0.0
        %932 = vmatprep.subr.mxu0 0.0
        %933 = vmatpush1.msra.mxu0 0.0
        %934 = vmatprep.subr.mxu0 0.0
        %935 = vmatpush1.msra.mxu0 0.0
        %936 = vmatprep.subr.mxu0 0.0
        %937 = vmatpush1.msra.mxu0 0.0
        %938 = vmatprep.subr.mxu0 0.0
        %939 = vmatpush1.msra.mxu0 0.0
        %940 = vmatprep.subr.mxu0 0.0
        %941 = vmatpush1.msra.mxu0 0.0
        %942 = vmatprep.subr.mxu0 0.0
        %943 = vmatpush1.msra.mxu0 0.0
        %944 = vmatprep.subr.mxu0 0.0
        %945 = vmatpush1.msra.mxu0 0.0
        %946 = vmatprep.subr.mxu0 0.0
        %947 = vmatpush1.msra.mxu0 0.0
        %948 = vmatprep.subr.mxu0 0.0
        %949 = vmatpush1.msra.mxu0 0.0
        %950 = vmatprep.subr.mxu0 0.0
        %951 = vmatpush1.msra.mxu0 0.0
        %952 = vmatprep.subr.mxu0 0.0
        %953 = vmatpush1.msra.mxu0 0.0
        %954 = vmatprep.subr.mxu0 0.0
        %955 = vmatpush1.msra.mxu0 0.0
        %956 = vmatprep.subr.mxu0 0.0
        %957 = vmatpush1.msra.mxu0 0.0
        %958 = vmatprep.subr.mxu0 0.0
        %959 = vmatpush1.msra.mxu0 0.0
        %960 = vmatprep.subr.mxu0 0.0
        %961 = vmatpush1.msra.mxu0 0.0
        %962 = vmatprep.subr.mxu0 0.0
        %963 = vmatpush1.msra.mxu0 0.0
        %964 = vmatprep.subr.mxu0 0.0
        %965 = vmatpush1.msra.mxu0 0.0
        %966 = vmatprep.mubr.f32.mxu0 0.0
        %967 = vmatmul.mubr.f32.gmra.mrb[0].mxu0 %v900
        %v968 = vpop.f32.mrb[0].mxu0
        %v969 = vadd.f32 %v896, %v968
        %v970 = vpop.f32.mrb[0].mxu0
        %971 = vdwg.mxu0
        %s972 = scalar_lea.vmem %s5, 16
        %v973 = vld [vmem:[%s972] sm:$0xff]
        %974 = vrot.lane.b32.xlu0 %v793, 1
        %v975 = vpop.permute.xlu0 %974
        %v976 = vsel %vm798, %v975, 0.0
        %977 = vst [vmem:[#allocation2] sm:$0xff] %v976
        %978 = vst [vmem:[#allocation2 + $0x8] sm:$0xff] %v793
        %979 = vrot.lane.b32.xlu0 %v793, 127
        %v980 = vpop.permute.xlu0 %979
        %v981 = vsel %vm805, %v980, 0.0
        %982 = vst [vmem:[#allocation2 + $0x10] sm:$0xff] %v981
        %v983 = vld [vmem:[#allocation2] sm:$0xff]
        %v984 = vld [vmem:[#allocation2 + $0x8] sm:$0xff]
        %v985 = vld [vmem:[#allocation2 + $0x10] sm:$0xff]
        %v987 = vsel %vm825, %v973, 0
        %989 = vmatprep.subr.mxu0 0.0
        %990 = vmatpush1.msra.mxu0 %v983
        %991 = vmatprep.subr.mxu0 0.0
        %992 = vmatpush1.msra.mxu0 %v984
        %993 = vmatprep.subr.mxu0 0.0
        %994 = vmatpush1.msra.mxu0 %v985
        %995 = vmatprep.subr.mxu0 0.0
        %996 = vmatpush1.msra.mxu0 0.0
        %997 = vmatprep.subr.mxu0 0.0
        %998 = vmatpush1.msra.mxu0 0.0
        %999 = vmatprep.subr.mxu0 0.0
        %1000 = vmatpush1.msra.mxu0 0.0
        %1001 = vmatprep.subr.mxu0 0.0
        %1002 = vmatpush1.msra.mxu0 0.0
        %1003 = vmatprep.subr.mxu0 0.0
        %1004 = vmatpush1.msra.mxu0 0.0
        %1005 = vmatprep.subr.mxu0 0.0
        %1006 = vmatpush1.msra.mxu0 0.0
        %1007 = vmatprep.subr.mxu0 0.0
        %1008 = vmatpush1.msra.mxu0 0.0
        %1009 = vmatprep.subr.mxu0 0.0
        %1010 = vmatpush1.msra.mxu0 0.0
        %1011 = vmatprep.subr.mxu0 0.0
        %1012 = vmatpush1.msra.mxu0 0.0
        %1013 = vmatprep.subr.mxu0 0.0
        %1014 = vmatpush1.msra.mxu0 0.0
        %1015 = vmatprep.subr.mxu0 0.0
        %1016 = vmatpush1.msra.mxu0 0.0
        %1017 = vmatprep.subr.mxu0 0.0
        %1018 = vmatpush1.msra.mxu0 0.0
        %1019 = vmatprep.subr.mxu0 0.0
        %1020 = vmatpush1.msra.mxu0 0.0
        %1021 = vmatprep.subr.mxu0 0.0
        %1022 = vmatpush1.msra.mxu0 0.0
        %1023 = vmatprep.subr.mxu0 0.0
        %1024 = vmatpush1.msra.mxu0 0.0
        %1025 = vmatprep.subr.mxu0 0.0
        %1026 = vmatpush1.msra.mxu0 0.0
        %1027 = vmatprep.subr.mxu0 0.0
        %1028 = vmatpush1.msra.mxu0 0.0
        %1029 = vmatprep.subr.mxu0 0.0
        %1030 = vmatpush1.msra.mxu0 0.0
        %1031 = vmatprep.subr.mxu0 0.0
        %1032 = vmatpush1.msra.mxu0 0.0
        %1033 = vmatprep.subr.mxu0 0.0
        %1034 = vmatpush1.msra.mxu0 0.0
        %1035 = vmatprep.subr.mxu0 0.0
        %1036 = vmatpush1.msra.mxu0 0.0
        %1037 = vmatprep.subr.mxu0 0.0
        %1038 = vmatpush1.msra.mxu0 0.0
        %1039 = vmatprep.subr.mxu0 0.0
        %1040 = vmatpush1.msra.mxu0 0.0
        %1041 = vmatprep.subr.mxu0 0.0
        %1042 = vmatpush1.msra.mxu0 0.0
        %1043 = vmatprep.subr.mxu0 0.0
        %1044 = vmatpush1.msra.mxu0 0.0
        %1045 = vmatprep.subr.mxu0 0.0
        %1046 = vmatpush1.msra.mxu0 0.0
        %1047 = vmatprep.subr.mxu0 0.0
        %1048 = vmatpush1.msra.mxu0 0.0
        %1049 = vmatprep.subr.mxu0 0.0
        %1050 = vmatpush1.msra.mxu0 0.0
        %1051 = vmatprep.subr.mxu0 0.0
        %1052 = vmatpush1.msra.mxu0 0.0
        %1053 = vmatprep.mubr.f32.mxu0 0.0
        %1054 = vmatmul.mubr.f32.gmra.mrb[0].mxu0 %v987
        %v1055 = vpop.f32.mrb[0].mxu0
        %v1056 = vadd.f32 0.0, %v1055
        %v1057 = vpop.f32.mrb[0].mxu0
        %1058 = vdwg.mxu0
        %v1059 = vadd.f32 %v969, %v1056
        %v1060 = vld [vmem:[%s6] sm:$0xff]
        %1062 = vset.pattern.permute.xlu0 0
        %1063 = vperm.xlu0 %1062, %v1060
        %v1064 = vpop.permute.xlu0 %1063
        %v1066 = vadd.f32 %v1059, %v1064
        %v1067 = vld [vmem:[%s7] sm:$0xff]
        %1068 = vrot.lane.b32.xlu0 %v1066, 1
        %v1069 = vpop.permute.xlu0 %1068
        %v1070 = vsel %vm798, %v1069, 0.0
        %1071 = vst [vmem:[#allocation2] sm:$0xff] %v1070
        %1072 = vst [vmem:[#allocation2 + $0x8] sm:$0xff] %v1066
        %1073 = vrot.lane.b32.xlu0 %v1066, 127
        %v1074 = vpop.permute.xlu0 %1073
        %v1075 = vsel %vm805, %v1074, 0.0
        %1076 = vst [vmem:[#allocation2 + $0x10] sm:$0xff] %v1075
        %v1077 = vld [vmem:[#allocation2] sm:$0xff]
        %v1078 = vld [vmem:[#allocation2 + $0x8] sm:$0xff]
        %v1079 = vld [vmem:[#allocation2 + $0x10] sm:$0xff]
        %v1080 = vld [vmem:[%s8] sm:$0xff]
        %1082 = vset.pattern.permute.xlu0 0
        %1083 = vperm.xlu0 %1082, %v1080
        %v1084 = vpop.permute.xlu0 %1083
        %v1087 = vsel %vm825, %v1067, 0
        %1089 = vmatprep.subr.mxu0 0.0
        %1090 = vmatpush1.msra.mxu0 %v1077
        %1091 = vmatprep.subr.mxu0 0.0
        %1092 = vmatpush1.msra.mxu0 %v1078
        %1093 = vmatprep.subr.mxu0 0.0
        %1094 = vmatpush1.msra.mxu0 %v1079
        %1095 = vmatprep.subr.mxu0 0.0
        %1096 = vmatpush1.msra.mxu0 0.0
        %1097 = vmatprep.subr.mxu0 0.0
        %1098 = vmatpush1.msra.mxu0 0.0
        %1099 = vmatprep.subr.mxu0 0.0
        %1100 = vmatpush1.msra.mxu0 0.0
        %1101 = vmatprep.subr.mxu0 0.0
        %1102 = vmatpush1.msra.mxu0 0.0
        %1103 = vmatprep.subr.mxu0 0.0
        %1104 = vmatpush1.msra.mxu0 0.0
        %1105 = vmatprep.subr.mxu0 0.0
        %1106 = vmatpush1.msra.mxu0 0.0
        %1107 = vmatprep.subr.mxu0 0.0
        %1108 = vmatpush1.msra.mxu0 0.0
        %1109 = vmatprep.subr.mxu0 0.0
        %1110 = vmatpush1.msra.mxu0 0.0
        %1111 = vmatprep.subr.mxu0 0.0
        %1112 = vmatpush1.msra.mxu0 0.0
        %1113 = vmatprep.subr.mxu0 0.0
        %1114 = vmatpush1.msra.mxu0 0.0
        %1115 = vmatprep.subr.mxu0 0.0
        %1116 = vmatpush1.msra.mxu0 0.0
        %1117 = vmatprep.subr.mxu0 0.0
        %1118 = vmatpush1.msra.mxu0 0.0
        %1119 = vmatprep.subr.mxu0 0.0
        %1120 = vmatpush1.msra.mxu0 0.0
        %1121 = vmatprep.subr.mxu0 0.0
        %1122 = vmatpush1.msra.mxu0 0.0
        %1123 = vmatprep.subr.mxu0 0.0
        %1124 = vmatpush1.msra.mxu0 0.0
        %1125 = vmatprep.subr.mxu0 0.0
        %1126 = vmatpush1.msra.mxu0 0.0
        %1127 = vmatprep.subr.mxu0 0.0
        %1128 = vmatpush1.msra.mxu0 0.0
        %1129 = vmatprep.subr.mxu0 0.0
        %1130 = vmatpush1.msra.mxu0 0.0
        %1131 = vmatprep.subr.mxu0 0.0
        %1132 = vmatpush1.msra.mxu0 0.0
        %1133 = vmatprep.subr.mxu0 0.0
        %1134 = vmatpush1.msra.mxu0 0.0
        %1135 = vmatprep.subr.mxu0 0.0
        %1136 = vmatpush1.msra.mxu0 0.0
        %1137 = vmatprep.subr.mxu0 0.0
        %1138 = vmatpush1.msra.mxu0 0.0
        %1139 = vmatprep.subr.mxu0 0.0
        %1140 = vmatpush1.msra.mxu0 0.0
        %1141 = vmatprep.subr.mxu0 0.0
        %1142 = vmatpush1.msra.mxu0 0.0
        %1143 = vmatprep.subr.mxu0 0.0
        %1144 = vmatpush1.msra.mxu0 0.0
        %1145 = vmatprep.subr.mxu0 0.0
        %1146 = vmatpush1.msra.mxu0 0.0
        %1147 = vmatprep.subr.mxu0 0.0
        %1148 = vmatpush1.msra.mxu0 0.0
        %1149 = vmatprep.subr.mxu0 0.0
        %1150 = vmatpush1.msra.mxu0 0.0
        %1151 = vmatprep.subr.mxu0 0.0
        %1152 = vmatpush1.msra.mxu0 0.0
        %1153 = vmatprep.mubr.f32.mxu0 0.0
        %1154 = vmatmul.mubr.f32.gmra.mrb[0].mxu0 %v1087
        %v1155 = vpop.f32.mrb[0].mxu0
        %v1156 = vadd.f32 %v1084, %v1155
        %v1157 = vpop.f32.mrb[0].mxu0
        %1158 = vdwg.mxu0
        %v1159 = vmax.f32 %v1156, 0.0
        %1160 = vst [vmem:[%s475] sm:$0xff] %v1159
        %s1161 = sand.u32 %s275, 1
        %s1162 = scalar_lea.sflag [#allocation5], %s1161
        %s1163 = sand.u32 %s275, 1
        %s1164 = smul.addr %s1163, 2
        %s1165 = scalar_lea.vmem [#allocation6], %s1164
        %s1166 = sand.u32 %s303, 1
        %s1167 = scalar_lea.sflag [#allocation8], %s1166
        %s1168 = sand.u32 %s303, 1
        %s1169 = smul.addr %s1168, 8
        %s1170 = scalar_lea.vmem [#allocation7], %s1169
        // Predicated region
        $region61: #{tpu_custom_call.1} parent=55 // pred_check
          %p1171 = pneg %p285
        $region62: #{tpu_custom_call.1} parent=55 // pred_check_branch
          %1173 = sbr.rel (%p1171) target = $region64
        $region63: #{tpu_custom_call.1} parent=55 // pred_region
          %s1175 = ssub.s32 32, 32
          %1176 = vsyncadd %s1162, %s1175
          %s1177 = smul.addr %s35, 2
          %s1178 = sadd.s32 %s36, %s1177
          %s1179 = smul.addr %s1178, 32
          %s1180 = scalar_lea.hbm %s9, %s1179
          %s1182 = sshll.u32 %s1165, 4
          %s1183 = int_to_ptr.vmem [resolvable:$true] %s1182
          %1185 = dma.vmem_to_hbm [thread:$0]  %s1183, 32, %s1180, %s1162
        $region64: #{tpu_custom_call.1} parent=55 // pred_fallthru
          _
        // Predicated region
        $region65: #{tpu_custom_call.1} parent=55 // pred_check
          %p1186 = pneg %p313
        $region66: #{tpu_custom_call.1} parent=55 // pred_check_branch
          %1188 = sbr.rel (%p1186) target = $region68
        $region67: #{tpu_custom_call.1} parent=55 // pred_region
          %s1190 = ssub.s32 128, 128
          %1191 = vsyncadd %s1167, %s1190
          %s1192 = smul.addr %s35, 2
          %s1193 = sadd.s32 %s36, %s1192
          %s1194 = smul.addr %s1193, 128
          %s1195 = scalar_lea.hbm %s10, %s1194
          %s1197 = sshll.u32 %s1170, 4
          %s1198 = int_to_ptr.vmem [resolvable:$true] %s1197
          %1200 = dma.vmem_to_hbm [thread:$0]  %s1198, 128, %s1195, %s1167
        $region68: #{tpu_custom_call.1} parent=55 // pred_fallthru
          _
      $region56: #{tpu_custom_call.1} parent=5 // pred_fallthru
        _
      %p1201 = scmp.le.s32.totalorder 2, %s26
      // Predicated region
      $region69: #{tpu_custom_call.1} parent=5 // pred_check
        %p1202 = pneg %p1201
      $region70: #{tpu_custom_call.1} parent=5 // pred_check_branch
        %1204 = sbr.rel (%p1202) target = $region72
      $region71: #{tpu_custom_call.1} parent=5 // pred_region
        %s1205 = ssub.s32 %s26, 2
        // Predicated region
        $region73: #{tpu_custom_call.1} parent=71 // pred_check
          %p1206 = pneg %p291
        $region74: #{tpu_custom_call.1} parent=71 // pred_check_branch
          %1208 = sbr.rel (%p1206) target = $region76
        $region75: #{tpu_custom_call.1} parent=71 // pred_region
          %s1209 = sand.u32 %s276, 1
          %s1210 = scalar_lea.sflag [#allocation5], %s1209
          %s1211 = sand.u32 %s276, 1
          %s1212 = smul.addr %s1211, 2
          %s1213 = scalar_lea.vmem [#allocation6], %s1212
          %1214 = dma.done %s1210, 32
        $region76: #{tpu_custom_call.1} parent=71 // pred_fallthru
          _
        // Predicated region
        $region77: #{tpu_custom_call.1} parent=71 // pred_check
          %p1215 = pneg %p319
        $region78: #{tpu_custom_call.1} parent=71 // pred_check_branch
          %1217 = sbr.rel (%p1215) target = $region80
        $region79: #{tpu_custom_call.1} parent=71 // pred_region
          %s1218 = sand.u32 %s304, 1
          %s1219 = scalar_lea.sflag [#allocation8], %s1218
          %s1220 = sand.u32 %s304, 1
          %s1221 = smul.addr %s1220, 8
          %s1222 = scalar_lea.vmem [#allocation7], %s1221
          %1223 = dma.done %s1219, 128
        $region80: #{tpu_custom_call.1} parent=71 // pred_fallthru
          _
      $region72: #{tpu_custom_call.1} parent=5 // pred_fallthru
        _
    $region6: #{tpu_custom_call.1} parent=1 // loop_footer
      %s30 = sadd.s32 1, %s26
    $region7: #{tpu_custom_call.1} parent=1 // loop_footer_branch
      %25 = sbr.rel target = $region3
    $region8: #{tpu_custom_call.1} parent=1 // loop_exit
      _
    %1224 = vsyncpa [#allocation4], 1
    %s1225 = scalar_lea.sflag [#allocation4], 1
    %1226 = vsyncpa %s1225, 1
    %1227 = vsyncpa [#allocation5], 1
    %s1228 = scalar_lea.sflag [#allocation5], 1
    %1229 = vsyncpa %s1228, 1
    %1230 = vsyncpa [#allocation8], 1
    %s1231 = scalar_lea.sflag [#allocation8], 1
    %1232 = vsyncpa %s1231, 1

</llo_original>
